<compile_context>
chip_gen: v6e
topology: v6e:2x2x1
jax: 0.10.0
libtpu: 0.0.40
codegen_flags: <defaults>
</compile_context>

<pallas_src>
import functools

import jax
import jax.numpy as jnp
from jax.experimental import pallas as pl
from jax.experimental.pallas import tpu as pltpu


# ----------------------------- in-kernel helpers -----------------------------

def _layernorm_f32(x_f32, g, b, eps=1e-5):
    mu = jnp.mean(x_f32, axis=-1, keepdims=True)
    var = jnp.mean(jnp.square(x_f32 - mu), axis=-1, keepdims=True)
    return (x_f32 - mu) * jax.lax.rsqrt(var + eps) * g + b


def _mha_proj(q_f32, k, v, wo_ref, bo_ref, num_heads):
    """softmax(q_h k_h^T) v_h per head, concat -> one (Nq,C)@(C,C) output projection.

    q_f32: (Nq, C) f32 with the softmax scale already applied.
    k, v : (Nk, C) bf16 (VMEM-scratch resident).
    Normalization (1/sum) is applied to the small (Nq, hd) head output, not to the
    (Nq, Nk) probability matrix.
    """
    Nq, C = q_f32.shape
    hd = C // num_heads
    q = q_f32.astype(k.dtype)
    ctx = []
    for h in range(num_heads):                       # static unroll, num_heads small
        lo, hi = h * hd, (h + 1) * hd
        # scores: q_h @ k_h^T without materializing a transpose
        s = jax.lax.dot_general(q[:, lo:hi], k[:, lo:hi],
                                (((1,), (1,)), ((), ())),
                                preferred_element_type=jnp.float32)      # (Nq, Nk)
        m = jnp.max(s, axis=-1, keepdims=True)
        p = jnp.exp(s - m)                                               # f32
        l = jnp.sum(p, axis=-1, keepdims=True)
        oh = jnp.dot(p.astype(v.dtype), v[:, lo:hi],
                     preferred_element_type=jnp.float32)                 # (Nq, hd)
        ctx.append(oh * pl.reciprocal(l, approx=True))                   # post-PV norm
    ctx = jnp.concatenate(ctx, axis=-1).astype(wo_ref.dtype)             # (Nq, C) bf16
    out = jnp.dot(ctx, wo_ref[...], preferred_element_type=jnp.float32)  # single K=C pass
    return out + bo_ref[...]


# ----------------------------- fused kernels -----------------------------

def _pvt_attn_sr_kernel(x_ref, patches_ref, wq_ref, wsr_ref, bsr_ref,
                        g_ref, beta_ref, wk_ref, wv_ref, wo_ref, bo_ref,
                        o_ref, k_sc, v_sc, *, num_heads, scale):
    """grid = (B, N // block_nq); sr_ratio > 1 path."""
    @pl.when(pl.program_id(1) == 0)
    def _():
        # SR conv (as matmul over space-to-depth patches) + bias + LayerNorm, then
        # k/v projections -> persistent VMEM scratch; done once per batch element.
        xs = jnp.dot(patches_ref[0], wsr_ref[...],
                     preferred_element_type=jnp.float32) + bsr_ref[...]
        xs = _layernorm_f32(xs, g_ref[...], beta_ref[...]).astype(k_sc.dtype)
        k_sc[...] = jnp.dot(xs, wk_ref[...],
                            preferred_element_type=jnp.float32).astype(k_sc.dtype)
        v_sc[...] = jnp.dot(xs, wv_ref[...],
                            preferred_element_type=jnp.float32).astype(v_sc.dtype)

    # q projection for this Nq tile (scale applied in f32 inside the kernel)
    q = jnp.dot(x_ref[0], wq_ref[...], preferred_element_type=jnp.float32) * scale
    o_ref[0] = _mha_proj(q, k_sc[...], v_sc[...], wo_ref, bo_ref,
                         num_heads).astype(o_ref.dtype)


def _pvt_attn_kernel(x_ref, wq_ref, wk_ref, wv_ref, wo_ref, bo_ref,
                     o_ref, k_sc, v_sc, *, num_heads, scale, block_nq):
    """grid = (B, N // block_nq); sr_ratio == 1 path (full x resident, read once/batch)."""
    nq = pl.program_id(1)

    @pl.when(nq == 0)
    def _():
        xs = x_ref[0]                                                    # (N, C) bf16
        k_sc[...] = jnp.dot(xs, wk_ref[...],
                            preferred_element_type=jnp.float32).astype(k_sc.dtype)
        v_sc[...] = jnp.dot(xs, wv_ref[...],
                            preferred_element_type=jnp.float32).astype(v_sc.dtype)

    start = pl.multiple_of(nq * block_nq, block_nq)
    x_tile = x_ref[0, pl.ds(start, block_nq), :]                         # (block_nq, C)
    q = jnp.dot(x_tile, wq_ref[...], preferred_element_type=jnp.float32) * scale
    o_ref[0] = _mha_proj(q, k_sc[...], v_sc[...], wo_ref, bo_ref,
                         num_heads).astype(o_ref.dtype)


# ----------------------------- forward wrapper -----------------------------

def pvt_attention(x, H, W, params, num_heads, sr_ratio, block_nq=None):
    B, N, C = x.shape
    hd = C // num_heads
    scale = hd ** (-0.5)
    out_dtype = x.dtype
    cdt = jnp.bfloat16                         # MXU operand dtype (f32 accumulation)

    if block_nq is None:
        block_nq = min(128, N)
    assert N % block_nq == 0 and block_nq % 8 == 0, (N, block_nq)
    num_nq = N // block_nq

    x_c = x.astype(cdt)
    wq = params["wq"].astype(cdt)
    wk = params["wkv"][:, :C].astype(cdt)
    wv = params["wkv"][:, C:].astype(cdt)
    wo = params["w_proj"].astype(cdt)
    bo = params["b_proj"].reshape(1, C).astype(jnp.float32)

    cparams = pltpu.CompilerParams(dimension_semantics=("parallel", "arbitrary"))

    if sr_ratio > 1:
        Hs, Ws = H // sr_ratio, W // sr_ratio
        Ns = Hs * Ws
        Kp = sr_ratio * sr_ratio * C
        # Conv2d(C, C, k=sr, stride=sr) == space-to-depth (pure layout, wrapper-side)
        # + one matmul inside the kernel.
        patches = x_c.reshape(B, Hs, sr_ratio, Ws, sr_ratio, C)
        patches = patches.transpose(0, 1, 3, 2, 4, 5).reshape(B, Ns, Kp)
        # PyTorch conv weight (Cout, Cin, kh, kw) -> (kh*kw*Cin, Cout)
        w_sr = jnp.transpose(params["w_sr"], (2, 3, 1, 0)).reshape(Kp, C).astype(cdt)
        b_sr = params["b_sr"].reshape(1, C).astype(jnp.float32)
        ln_g = params["ln_g"].reshape(1, C).astype(jnp.float32)
        ln_b = params["ln_b"].reshape(1, C).astype(jnp.float32)

        kern = functools.partial(_pvt_attn_sr_kernel,
                                 num_heads=num_heads, scale=scale)
        return pl.pallas_call(
            kern,
            out_shape=jax.ShapeDtypeStruct((B, N, C), out_dtype),
            grid=(B, num_nq),
            in_specs=[
                pl.BlockSpec((1, block_nq, C), lambda b, n: (b, n, 0)),  # x tile (q)
                pl.BlockSpec((1, Ns, Kp), lambda b, n: (b, 0, 0)),       # patches, 1x/batch
                pl.BlockSpec((C, C), lambda b, n: (0, 0)),               # wq
                pl.BlockSpec((Kp, C), lambda b, n: (0, 0)),              # w_sr
                pl.BlockSpec((1, C), lambda b, n: (0, 0)),               # b_sr
                pl.BlockSpec((1, C), lambda b, n: (0, 0)),               # ln gamma
                pl.BlockSpec((1, C), lambda b, n: (0, 0)),               # ln beta
                pl.BlockSpec((C, C), lambda b, n: (0, 0)),               # wk
                pl.BlockSpec((C, C), lambda b, n: (0, 0)),               # wv
                pl.BlockSpec((C, C), lambda b, n: (0, 0)),               # w_proj
                pl.BlockSpec((1, C), lambda b, n: (0, 0)),               # b_proj
            ],
            out_specs=pl.BlockSpec((1, block_nq, C), lambda b, n: (b, n, 0)),
            scratch_shapes=[pltpu.VMEM((Ns, C), cdt),                    # k scratch
                            pltpu.VMEM((Ns, C), cdt)],                   # v scratch
            compiler_params=cparams,
        )(x_c, patches, wq, w_sr, b_sr, ln_g, ln_b, wk, wv, wo, bo)

    kern = functools.partial(_pvt_attn_kernel,
                             num_heads=num_heads, scale=scale, block_nq=block_nq)
    return pl.pallas_call(
        kern,
        out_shape=jax.ShapeDtypeStruct((B, N, C), out_dtype),
        grid=(B, num_nq),
        in_specs=[
            pl.BlockSpec((1, N, C), lambda b, n: (b, 0, 0)),             # full x, 1x/batch
            pl.BlockSpec((C, C), lambda b, n: (0, 0)),                   # wq
            pl.BlockSpec((C, C), lambda b, n: (0, 0)),                   # wk
            pl.BlockSpec((C, C), lambda b, n: (0, 0)),                   # wv
            pl.BlockSpec((C, C), lambda b, n: (0, 0)),                   # w_proj
            pl.BlockSpec((1, C), lambda b, n: (0, 0)),                   # b_proj
        ],
        out_specs=pl.BlockSpec((1, block_nq, C), lambda b, n: (b, n, 0)),
        scratch_shapes=[pltpu.VMEM((N, C), cdt),
                        pltpu.VMEM((N, C), cdt)],
        compiler_params=cparams,
    )(x_c, wq, wk, wv, wo, bo)


# ----------------------------- pure-JAX reference -----------------------------

def reference(x, H, W, p, num_heads, sr_ratio):
    B, N, C = x.shape
    hd = C // num_heads
    scale = hd ** (-0.5)
    q = (x @ p["wq"]).reshape(B, N, num_heads, hd).transpose(0, 2, 1, 3)
    if sr_ratio > 1:
        xh = x.reshape(B, H, W, C).transpose(0, 3, 1, 2)                 # NCHW
        y = jax.lax.conv_general_dilated(
            xh, p["w_sr"], (sr_ratio, sr_ratio), "VALID",
            dimension_numbers=("NCHW", "OIHW", "NCHW"))
        y = y + p["b_sr"][None, :, None, None]
        xs = y.reshape(B, C, -1).transpose(0, 2, 1)
        mu = xs.mean(-1, keepdims=True)
        var = ((xs - mu) ** 2).mean(-1, keepdims=True)
        xs = (xs - mu) / jnp.sqrt(var + 1e-5) * p["ln_g"] + p["ln_b"]
    else:
        xs = x
    kv = (xs @ p["wkv"]).reshape(B, -1, 2, num_heads, hd).transpose(2, 0, 3, 1, 4)
    k, v = kv[0], kv[1]
    attn = jax.nn.softmax((q @ jnp.swapaxes(k, -2, -1)) * scale, axis=-1)
    out = (attn @ v).transpose(0, 2, 1, 3).reshape(B, N, C)
    return out @ p["w_proj"] + p["b_proj"]


# ----------------------------- main -----------------------------

if __name__ == "__main__":
    B, C, num_heads = 2, 32, 2
    H = W = 8
    N = H * W
    dtype = jnp.float32

    key = jax.random.PRNGKey(0)
    ks = jax.random.split(key, 9)
    params = {
        "wq":     0.05 * jax.random.normal(ks[0], (C, C), dtype),
        "wkv":    0.05 * jax.random.normal(ks[1], (C, 2 * C), dtype),
        "w_proj": 0.05 * jax.random.normal(ks[2], (C, C), dtype),
        "b_proj": 0.05 * jax.random.normal(ks[3], (C,), dtype),
        "w_sr":   0.05 * jax.random.normal(ks[4], (C, C, 2, 2), dtype),
        "b_sr":   0.05 * jax.random.normal(ks[5], (C,), dtype),
        "ln_g":   1.0 + 0.05 * jax.random.normal(ks[6], (C,), dtype),
        "ln_b":   0.05 * jax.random.normal(ks[7], (C,), dtype),
    }
    x = jax.random.normal(ks[8], (B, N, C), dtype)

    for sr_ratio in (2, 1):
        fwd = jax.jit(lambda xx, pp, sr=sr_ratio: pvt_attention(
            xx, H, W, pp, num_heads, sr, block_nq=32))
        out = jax.block_until_ready(fwd(x, params))
        ref = jax.block_until_ready(reference(x, H, W, params, num_heads, sr_ratio))
        assert out.shape == (B, N, C)
        max_err = jnp.max(jnp.abs(out - ref))
        # tolerance covers bf16 MXU operands (f32 accumulation) + approx reciprocal
        assert jnp.allclose(out, ref, rtol=2e-2, atol=2e-2), \
            f"sr_ratio={sr_ratio} max err {max_err}"

    print("KERNEL_OK")
</pallas_src>

<mosaic_0001>
module attributes {stable_mosaic.version = 11 : i64} {
  func.func @_pvt_attn_sr_kernel(%arg0: i32, %arg1: i32, %arg2: memref<1x32x32xbf16, #tpu.memory_space<vmem>>, %arg3: memref<1x16x128xbf16, #tpu.memory_space<vmem>>, %arg4: memref<32x32xbf16, #tpu.memory_space<vmem>>, %arg5: memref<128x32xbf16, #tpu.memory_space<vmem>>, %arg6: memref<1x32xf32, #tpu.memory_space<vmem>>, %arg7: memref<1x32xf32, #tpu.memory_space<vmem>>, %arg8: memref<1x32xf32, #tpu.memory_space<vmem>>, %arg9: memref<32x32xbf16, #tpu.memory_space<vmem>>, %arg10: memref<32x32xbf16, #tpu.memory_space<vmem>>, %arg11: memref<32x32xbf16, #tpu.memory_space<vmem>>, %arg12: memref<1x32xf32, #tpu.memory_space<vmem>>, %arg13: memref<1x32x32xf32, #tpu.memory_space<vmem>>, %arg14: memref<16x32xbf16, #tpu.memory_space<vmem>>, %arg15: memref<16x32xbf16, #tpu.memory_space<vmem>>) attributes {dimension_semantics = [#tpu.dimension_semantics<parallel>, #tpu.dimension_semantics<arbitrary>], iteration_bounds = array<i64: 2, 2>, scalar_prefetch = 0 : i64, scratch_operands = 2 : i64, tpu.core_type = #tpu.core_type<tc>, window_params = [{transform_indices = @transform_0, window_bounds = array<i64: 1, 32, 32>}, {transform_indices = @transform_1, window_bounds = array<i64: 1, 16, 128>}, {pipeline_mode = #tpu.pipeline_mode<synchronous>, transform_indices = @transform_2, window_bounds = array<i64: 32, 32>}, {pipeline_mode = #tpu.pipeline_mode<synchronous>, transform_indices = @transform_3, window_bounds = array<i64: 128, 32>}, {pipeline_mode = #tpu.pipeline_mode<synchronous>, transform_indices = @transform_4, window_bounds = array<i64: 1, 32>}, {pipeline_mode = #tpu.pipeline_mode<synchronous>, transform_indices = @transform_5, window_bounds = array<i64: 1, 32>}, {pipeline_mode = #tpu.pipeline_mode<synchronous>, transform_indices = @transform_6, window_bounds = array<i64: 1, 32>}, {pipeline_mode = #tpu.pipeline_mode<synchronous>, transform_indices = @transform_7, window_bounds = array<i64: 32, 32>}, {pipeline_mode = #tpu.pipeline_mode<synchronous>, transform_indices = @transform_8, window_bounds = array<i64: 32, 32>}, {pipeline_mode = #tpu.pipeline_mode<synchronous>, transform_indices = @transform_9, window_bounds = array<i64: 32, 32>}, {pipeline_mode = #tpu.pipeline_mode<synchronous>, transform_indices = @transform_10, window_bounds = array<i64: 1, 32>}, {transform_indices = @transform_11, window_bounds = array<i64: 1, 32, 32>}]} {
    %c0_i32 = arith.constant 0 : i32
    %0 = arith.cmpi eq, %arg1, %c0_i32 : i32
    %1 = arith.extui %0 : i1 to i32
    %c0_i32_0 = arith.constant 0 : i32
    %2 = arith.cmpi ne, %1, %c0_i32_0 : i32
    scf.if %2 {
      %c0_26 = arith.constant 0 : index
      %c0_27 = arith.constant 0 : index
      %c0_28 = arith.constant 0 : index
      %54 = vector.load %arg3[%c0_26, %c0_27, %c0_28] : memref<1x16x128xbf16, #tpu.memory_space<vmem>>, vector<1x16x128xbf16>
      %55 = vector.shape_cast %54 : vector<1x16x128xbf16> to vector<16x128xbf16>
      %c0_29 = arith.constant 0 : index
      %c0_30 = arith.constant 0 : index
      %56 = vector.load %arg5[%c0_29, %c0_30] : memref<128x32xbf16, #tpu.memory_space<vmem>>, vector<128x32xbf16>
      %cst_31 = arith.constant dense<0.000000e+00> : vector<16x32xf32>
      %57 = tpu.matmul %55, %56, %cst_31 {dimension_numbers = #tpu.dot_dimension_numbers<[1], [0], [0], [1], [0, 0, 1, 1], [], []>} : vector<16x128xbf16>, vector<128x32xbf16>, vector<16x32xf32> -> vector<16x32xf32>
      %c0_32 = arith.constant 0 : index
      %c0_33 = arith.constant 0 : index
      %58 = vector.load %arg6[%c0_32, %c0_33] : memref<1x32xf32, #tpu.memory_space<vmem>>, vector<1x32xf32>
      %59 = vector.broadcast %58 : vector<1x32xf32> to vector<16x32xf32>
      %60 = arith.addf %57, %59 : vector<16x32xf32>
      %c0_34 = arith.constant 0 : index
      %c0_35 = arith.constant 0 : index
      %61 = vector.load %arg7[%c0_34, %c0_35] : memref<1x32xf32, #tpu.memory_space<vmem>>, vector<1x32xf32>
      %c0_36 = arith.constant 0 : index
      %c0_37 = arith.constant 0 : index
      %62 = vector.load %arg8[%c0_36, %c0_37] : memref<1x32xf32, #tpu.memory_space<vmem>>, vector<1x32xf32>
      %cst_38 = arith.constant dense<0.000000e+00> : vector<16xf32>
      %63 = vector.multi_reduction <add>, %60, %cst_38 [1] : vector<16x32xf32> to vector<16xf32>
      %64 = vector.shape_cast %63 : vector<16xf32> to vector<16x1xf32>
      %cst_39 = arith.constant 3.200000e+01 : f32
      %65 = vector.broadcast %cst_39 : f32 to vector<16x1xf32>
      %66 = arith.divf %64, %65 : vector<16x1xf32>
      %67 = vector.broadcast %66 : vector<16x1xf32> to vector<16x32xf32>
      %68 = arith.subf %60, %67 : vector<16x32xf32>
      %69 = arith.mulf %68, %68 : vector<16x32xf32>
      %cst_40 = arith.constant dense<0.000000e+00> : vector<16xf32>
      %70 = vector.multi_reduction <add>, %69, %cst_40 [1] : vector<16x32xf32> to vector<16xf32>
      %71 = vector.shape_cast %70 : vector<16xf32> to vector<16x1xf32>
      %cst_41 = arith.constant 3.200000e+01 : f32
      %72 = vector.broadcast %cst_41 : f32 to vector<16x1xf32>
      %73 = arith.divf %71, %72 : vector<16x1xf32>
      %74 = vector.broadcast %66 : vector<16x1xf32> to vector<16x32xf32>
      %75 = arith.subf %60, %74 : vector<16x32xf32>
      %cst_42 = arith.constant 9.99999974E-6 : f32
      %76 = vector.broadcast %cst_42 : f32 to vector<16x1xf32>
      %77 = arith.addf %73, %76 : vector<16x1xf32>
      %78 = math.rsqrt %77 : vector<16x1xf32>
      %79 = vector.broadcast %78 : vector<16x1xf32> to vector<16x32xf32>
      %80 = arith.mulf %75, %79 : vector<16x32xf32>
      %81 = vector.broadcast %61 : vector<1x32xf32> to vector<16x32xf32>
      %82 = arith.mulf %80, %81 : vector<16x32xf32>
      %83 = vector.broadcast %62 : vector<1x32xf32> to vector<16x32xf32>
      %84 = arith.addf %82, %83 : vector<16x32xf32>
      %85 = arith.truncf %84 : vector<16x32xf32> to vector<16x32xbf16>
      %c0_43 = arith.constant 0 : index
      %c0_44 = arith.constant 0 : index
      %86 = vector.load %arg9[%c0_43, %c0_44] : memref<32x32xbf16, #tpu.memory_space<vmem>>, vector<32x32xbf16>
      %cst_45 = arith.constant dense<0.000000e+00> : vector<16x32xf32>
      %87 = tpu.matmul %85, %86, %cst_45 {dimension_numbers = #tpu.dot_dimension_numbers<[1], [0], [0], [1], [0, 0, 1, 1], [], []>} : vector<16x32xbf16>, vector<32x32xbf16>, vector<16x32xf32> -> vector<16x32xf32>
      %88 = arith.truncf %87 : vector<16x32xf32> to vector<16x32xbf16>
      %c0_46 = arith.constant 0 : index
      %c0_47 = arith.constant 0 : index
      %89 = vector.load %arg14[%c0_46, %c0_47] : memref<16x32xbf16, #tpu.memory_space<vmem>>, vector<16x32xbf16>
      tpu.vector_store %arg14[%c0_46, %c0_47], %88 {strides = array<i32>} : memref<16x32xbf16, #tpu.memory_space<vmem>>, vector<16x32xbf16>,
      %c0_48 = arith.constant 0 : index
      %c0_49 = arith.constant 0 : index
      %90 = vector.load %arg10[%c0_48, %c0_49] : memref<32x32xbf16, #tpu.memory_space<vmem>>, vector<32x32xbf16>
      %cst_50 = arith.constant dense<0.000000e+00> : vector<16x32xf32>
      %91 = tpu.matmul %85, %90, %cst_50 {dimension_numbers = #tpu.dot_dimension_numbers<[1], [0], [0], [1], [0, 0, 1, 1], [], []>} : vector<16x32xbf16>, vector<32x32xbf16>, vector<16x32xf32> -> vector<16x32xf32>
      %92 = arith.truncf %91 : vector<16x32xf32> to vector<16x32xbf16>
      %c0_51 = arith.constant 0 : index
      %c0_52 = arith.constant 0 : index
      %93 = vector.load %arg15[%c0_51, %c0_52] : memref<16x32xbf16, #tpu.memory_space<vmem>>, vector<16x32xbf16>
      tpu.vector_store %arg15[%c0_51, %c0_52], %92 {strides = array<i32>} : memref<16x32xbf16, #tpu.memory_space<vmem>>, vector<16x32xbf16>,
    } else {
    }
    %c0 = arith.constant 0 : index
    %c0_1 = arith.constant 0 : index
    %c0_2 = arith.constant 0 : index
    %3 = vector.load %arg2[%c0, %c0_1, %c0_2] : memref<1x32x32xbf16, #tpu.memory_space<vmem>>, vector<1x32x32xbf16>
    %4 = vector.shape_cast %3 : vector<1x32x32xbf16> to vector<32x32xbf16>
    %c0_3 = arith.constant 0 : index
    %c0_4 = arith.constant 0 : index
    %5 = vector.load %arg4[%c0_3, %c0_4] : memref<32x32xbf16, #tpu.memory_space<vmem>>, vector<32x32xbf16>
    %cst = arith.constant dense<0.000000e+00> : vector<32x32xf32>
    %6 = tpu.matmul %4, %5, %cst {dimension_numbers = #tpu.dot_dimension_numbers<[1], [0], [0], [1], [0, 0, 1, 1], [], []>} : vector<32x32xbf16>, vector<32x32xbf16>, vector<32x32xf32> -> vector<32x32xf32>
    %cst_5 = arith.constant 2.500000e-01 : f32
    %7 = vector.broadcast %cst_5 : f32 to vector<32x32xf32>
    %8 = arith.mulf %6, %7 : vector<32x32xf32>
    %c0_6 = arith.constant 0 : index
    %c0_7 = arith.constant 0 : index
    %9 = vector.load %arg14[%c0_6, %c0_7] : memref<16x32xbf16, #tpu.memory_space<vmem>>, vector<16x32xbf16>
    %c0_8 = arith.constant 0 : index
    %c0_9 = arith.constant 0 : index
    %10 = vector.load %arg15[%c0_8, %c0_9] : memref<16x32xbf16, #tpu.memory_space<vmem>>, vector<16x32xbf16>
    %11 = arith.truncf %8 : vector<32x32xf32> to vector<32x32xbf16>
    %12 = vector.extract_strided_slice %11 {offsets = [0, 0], sizes = [32, 16], strides = [1, 1]} : vector<32x32xbf16> to vector<32x16xbf16>
    %13 = vector.extract_strided_slice %9 {offsets = [0, 0], sizes = [16, 16], strides = [1, 1]} : vector<16x32xbf16> to vector<16x16xbf16>
    %cst_10 = arith.constant dense<0.000000e+00> : vector<32x16xf32>
    %14 = tpu.matmul %12, %13, %cst_10 {dimension_numbers = #tpu.dot_dimension_numbers<[1], [1], [0], [0], [0, 0, 1, 0], [], []>} : vector<32x16xbf16>, vector<16x16xbf16>, vector<32x16xf32> -> vector<32x16xf32>
    %cst_11 = arith.constant dense<0xFF800000> : vector<32xf32>
    %15 = vector.multi_reduction <maximumf>, %14, %cst_11 [1] : vector<32x16xf32> to vector<32xf32>
    %16 = vector.shape_cast %15 : vector<32xf32> to vector<32x1xf32>
    %17 = vector.broadcast %16 : vector<32x1xf32> to vector<32x16xf32>
    %18 = arith.subf %14, %17 : vector<32x16xf32>
    %19 = math.exp %18 : vector<32x16xf32>
    %cst_12 = arith.constant dense<0.000000e+00> : vector<32xf32>
    %20 = vector.multi_reduction <add>, %19, %cst_12 [1] : vector<32x16xf32> to vector<32xf32>
    %21 = vector.shape_cast %20 : vector<32xf32> to vector<32x1xf32>
    %22 = arith.truncf %19 : vector<32x16xf32> to vector<32x16xbf16>
    %23 = vector.extract_strided_slice %10 {offsets = [0, 0], sizes = [16, 16], strides = [1, 1]} : vector<16x32xbf16> to vector<16x16xbf16>
    %cst_13 = arith.constant dense<0.000000e+00> : vector<32x16xf32>
    %24 = tpu.matmul %22, %23, %cst_13 {dimension_numbers = #tpu.dot_dimension_numbers<[1], [0], [0], [1], [0, 0, 1, 1], [], []>} : vector<32x16xbf16>, vector<16x16xbf16>, vector<32x16xf32> -> vector<32x16xf32>
    %25 = tpu.reciprocal %21 {approx = true} : vector<32x1xf32> -> vector<32x1xf32>
    %26 = vector.broadcast %25 : vector<32x1xf32> to vector<32x16xf32>
    %27 = arith.mulf %24, %26 : vector<32x16xf32>
    %28 = vector.extract_strided_slice %11 {offsets = [0, 16], sizes = [32, 16], strides = [1, 1]} : vector<32x32xbf16> to vector<32x16xbf16>
    %29 = vector.extract_strided_slice %9 {offsets = [0, 16], sizes = [16, 16], strides = [1, 1]} : vector<16x32xbf16> to vector<16x16xbf16>
    %cst_14 = arith.constant dense<0.000000e+00> : vector<32x16xf32>
    %30 = tpu.matmul %28, %29, %cst_14 {dimension_numbers = #tpu.dot_dimension_numbers<[1], [1], [0], [0], [0, 0, 1, 0], [], []>} : vector<32x16xbf16>, vector<16x16xbf16>, vector<32x16xf32> -> vector<32x16xf32>
    %cst_15 = arith.constant dense<0xFF800000> : vector<32xf32>
    %31 = vector.multi_reduction <maximumf>, %30, %cst_15 [1] : vector<32x16xf32> to vector<32xf32>
    %32 = vector.shape_cast %31 : vector<32xf32> to vector<32x1xf32>
    %33 = vector.broadcast %32 : vector<32x1xf32> to vector<32x16xf32>
    %34 = arith.subf %30, %33 : vector<32x16xf32>
    %35 = math.exp %34 : vector<32x16xf32>
    %cst_16 = arith.constant dense<0.000000e+00> : vector<32xf32>
    %36 = vector.multi_reduction <add>, %35, %cst_16 [1] : vector<32x16xf32> to vector<32xf32>
    %37 = vector.shape_cast %36 : vector<32xf32> to vector<32x1xf32>
    %38 = arith.truncf %35 : vector<32x16xf32> to vector<32x16xbf16>
    %39 = vector.extract_strided_slice %10 {offsets = [0, 16], sizes = [16, 16], strides = [1, 1]} : vector<16x32xbf16> to vector<16x16xbf16>
    %cst_17 = arith.constant dense<0.000000e+00> : vector<32x16xf32>
    %40 = tpu.matmul %38, %39, %cst_17 {dimension_numbers = #tpu.dot_dimension_numbers<[1], [0], [0], [1], [0, 0, 1, 1], [], []>} : vector<32x16xbf16>, vector<16x16xbf16>, vector<32x16xf32> -> vector<32x16xf32>
    %41 = tpu.reciprocal %37 {approx = true} : vector<32x1xf32> -> vector<32x1xf32>
    %42 = vector.broadcast %41 : vector<32x1xf32> to vector<32x16xf32>
    %43 = arith.mulf %40, %42 : vector<32x16xf32>
    %44 = tpu.concatenate %27, %43 in 1 : vector<32x16xf32>, vector<32x16xf32> -> vector<32x32xf32>
    %45 = arith.truncf %44 : vector<32x32xf32> to vector<32x32xbf16>
    %c0_18 = arith.constant 0 : index
    %c0_19 = arith.constant 0 : index
    %46 = vector.load %arg11[%c0_18, %c0_19] : memref<32x32xbf16, #tpu.memory_space<vmem>>, vector<32x32xbf16>
    %cst_20 = arith.constant dense<0.000000e+00> : vector<32x32xf32>
    %47 = tpu.matmul %45, %46, %cst_20 {dimension_numbers = #tpu.dot_dimension_numbers<[1], [0], [0], [1], [0, 0, 1, 1], [], []>} : vector<32x32xbf16>, vector<32x32xbf16>, vector<32x32xf32> -> vector<32x32xf32>
    %c0_21 = arith.constant 0 : index
    %c0_22 = arith.constant 0 : index
    %48 = vector.load %arg12[%c0_21, %c0_22] : memref<1x32xf32, #tpu.memory_space<vmem>>, vector<1x32xf32>
    %49 = vector.broadcast %48 : vector<1x32xf32> to vector<32x32xf32>
    %50 = arith.addf %47, %49 : vector<32x32xf32>
    %c0_23 = arith.constant 0 : index
    %c0_24 = arith.constant 0 : index
    %c0_25 = arith.constant 0 : index
    %51 = vector.load %arg13[%c0_23, %c0_24, %c0_25] : memref<1x32x32xf32, #tpu.memory_space<vmem>>, vector<1x32x32xf32>
    %52 = vector.shape_cast %51 : vector<1x32x32xf32> to vector<32x32xf32>
    %53 = vector.shape_cast %50 : vector<32x32xf32> to vector<1x32x32xf32>
    tpu.vector_store %arg13[%c0_23, %c0_24, %c0_25], %53 {strides = array<i32>} : memref<1x32x32xf32, #tpu.memory_space<vmem>>, vector<1x32x32xf32>,
    return
  }
  func.func @transform_0(%arg0: i32, %arg1: i32) -> (i32, i32, i32) {
    %c0_i32 = arith.constant 0 : i32
    %c0_i32_0 = arith.constant 0 : i32
    return %arg0, %arg1, %c0_i32 : i32, i32, i32
  }
  func.func @transform_1(%arg0: i32, %arg1: i32) -> (i32, i32, i32) {
    %c0_i32 = arith.constant 0 : i32
    %c0_i32_0 = arith.constant 0 : i32
    %c0_i32_1 = arith.constant 0 : i32
    return %arg0, %c0_i32, %c0_i32_0 : i32, i32, i32
  }
  func.func @transform_2(%arg0: i32, %arg1: i32) -> (i32, i32) {
    %c0_i32 = arith.constant 0 : i32
    %c0_i32_0 = arith.constant 0 : i32
    %c0_i32_1 = arith.constant 0 : i32
    return %c0_i32, %c0_i32_0 : i32, i32
  }
  func.func @transform_3(%arg0: i32, %arg1: i32) -> (i32, i32) {
    %c0_i32 = arith.constant 0 : i32
    %c0_i32_0 = arith.constant 0 : i32
    %c0_i32_1 = arith.constant 0 : i32
    return %c0_i32, %c0_i32_0 : i32, i32
  }
  func.func @transform_4(%arg0: i32, %arg1: i32) -> (i32, i32) {
    %c0_i32 = arith.constant 0 : i32
    %c0_i32_0 = arith.constant 0 : i32
    %c0_i32_1 = arith.constant 0 : i32
    return %c0_i32, %c0_i32_0 : i32, i32
  }
  func.func @transform_5(%arg0: i32, %arg1: i32) -> (i32, i32) {
    %c0_i32 = arith.constant 0 : i32
    %c0_i32_0 = arith.constant 0 : i32
    %c0_i32_1 = arith.constant 0 : i32
    return %c0_i32, %c0_i32_0 : i32, i32
  }
  func.func @transform_6(%arg0: i32, %arg1: i32) -> (i32, i32) {
    %c0_i32 = arith.constant 0 : i32
    %c0_i32_0 = arith.constant 0 : i32
    %c0_i32_1 = arith.constant 0 : i32
    return %c0_i32, %c0_i32_0 : i32, i32
  }
  func.func @transform_7(%arg0: i32, %arg1: i32) -> (i32, i32) {
    %c0_i32 = arith.constant 0 : i32
    %c0_i32_0 = arith.constant 0 : i32
    %c0_i32_1 = arith.constant 0 : i32
    return %c0_i32, %c0_i32_0 : i32, i32
  }
  func.func @transform_8(%arg0: i32, %arg1: i32) -> (i32, i32) {
    %c0_i32 = arith.constant 0 : i32
    %c0_i32_0 = arith.constant 0 : i32
    %c0_i32_1 = arith.constant 0 : i32
    return %c0_i32, %c0_i32_0 : i32, i32
  }
  func.func @transform_9(%arg0: i32, %arg1: i32) -> (i32, i32) {
    %c0_i32 = arith.constant 0 : i32
    %c0_i32_0 = arith.constant 0 : i32
    %c0_i32_1 = arith.constant 0 : i32
    return %c0_i32, %c0_i32_0 : i32, i32
  }
  func.func @transform_10(%arg0: i32, %arg1: i32) -> (i32, i32) {
    %c0_i32 = arith.constant 0 : i32
    %c0_i32_0 = arith.constant 0 : i32
    %c0_i32_1 = arith.constant 0 : i32
    return %c0_i32, %c0_i32_0 : i32, i32
  }
  func.func @transform_11(%arg0: i32, %arg1: i32) -> (i32, i32, i32) {
    %c0_i32 = arith.constant 0 : i32
    %c0_i32_0 = arith.constant 0 : i32
    return %arg0, %arg1, %c0_i32 : i32, i32, i32
  }
}

</mosaic_0001>

<llo_original>
// kernel: _lambda_.1
$region0: #{_lambda_.1}
  #allocation0 [shape = 'u32[]', space=smem, size = 0x4, offset = 0x4, fixed_abs, tag = 'smem constant byte address 0x4 - core index']
  #allocation1 [shape = 'u32[144,128]{1,0:T(1,128)}', space=vmem, size = 0x12000, scoped, tag = 'internal scratch']
  #allocation2 [shape = 'bf16[16,32]{1,0:T(8,128)(2,1)}', space=vmem, size = 0x1000, scoped, tag = 'scratch operand']
  #allocation3 [shape = 'bf16[16,32]{1,0:T(8,128)(2,1)}', space=vmem, size = 0x1000, scoped, tag = 'scratch operand']
  %s0 = inlined_call_operand.vmem [shape: bf16[2,64,32], index: 0, kind: input, shape index: {}]
  %s1 = inlined_call_operand.vmem [shape: bf16[2,16,128], index: 1, kind: input, shape index: {}]
  %s2 = inlined_call_operand.vmem [shape: bf16[32,32], index: 2, kind: input, shape index: {}]
  %s3 = inlined_call_operand.vmem [shape: bf16[128,32], index: 3, kind: input, shape index: {}]
  %s4 = inlined_call_operand.vmem [shape: f32[1,32], index: 4, kind: input, shape index: {}]
  %s5 = inlined_call_operand.vmem [shape: f32[1,32], index: 5, kind: input, shape index: {}]
  %s6 = inlined_call_operand.vmem [shape: f32[1,32], index: 6, kind: input, shape index: {}]
  %s7 = inlined_call_operand.vmem [shape: bf16[32,32], index: 7, kind: input, shape index: {}]
  %s8 = inlined_call_operand.vmem [shape: bf16[32,32], index: 8, kind: input, shape index: {}]
  %s9 = inlined_call_operand.vmem [shape: bf16[32,32], index: 9, kind: input, shape index: {}]
  %s10 = inlined_call_operand.vmem [shape: f32[1,32], index: 10, kind: input, shape index: {}]
  %s11 = inlined_call_operand.vmem [shape: f32[2,64,32], index: 11, kind: output, shape index: {}]
  %s12 = sld [smem:[#allocation0]]
  $region81: #{_lambda_.1} parent=0
    _
  %s14 = ssub.s32 1, %s12
  %s15 = scalar_select 0, %s14, %s12
  loop: start=0, step=1, limit=6
  $region2: #{_lambda_.1} parent=0 // loop_pre_header
    _
  $region3: #{_lambda_.1} parent=0 // loop_header
    %s17 = sphi 0, %s21
    %p18 = scmp.ge.s32.totalorder %s17, 6
    %s24 = sphi 0, %s36
    %s25 = sphi 0, %s32
    %s26 = sphi 0, %s24
    %s27 = sphi 0, %s25
    %s28 = sphi 0, %s26
    %s29 = sphi 0, %s27
    %s41 = sphi 0, %s43
    %s44 = sphi 0, %s41
    %s45 = sphi 0, %s44
    %s61 = sphi 0, %s45
    %s67 = sphi 0, %s69
    %s70 = sphi 0, %s67
    %s71 = sphi 0, %s70
    %s87 = sphi 0, %s71
    %s91 = sphi 0, %s91
    %s93 = sphi 0, %s91
    %s94 = sphi 0, %s93
    %s108 = sphi 0, %s94
    %s112 = sphi 0, %s112
    %s114 = sphi 0, %s112
    %s115 = sphi 0, %s114
    %s129 = sphi 0, %s115
    %s133 = sphi 0, %s133
    %s135 = sphi 0, %s133
    %s136 = sphi 0, %s135
    %s150 = sphi 0, %s136
    %s154 = sphi 0, %s154
    %s156 = sphi 0, %s154
    %s157 = sphi 0, %s156
    %s171 = sphi 0, %s157
    %s175 = sphi 0, %s175
    %s177 = sphi 0, %s175
    %s178 = sphi 0, %s177
    %s192 = sphi 0, %s178
    %s196 = sphi 0, %s196
    %s198 = sphi 0, %s196
    %s199 = sphi 0, %s198
    %s213 = sphi 0, %s199
    %s217 = sphi 0, %s217
    %s219 = sphi 0, %s217
    %s220 = sphi 0, %s219
    %s234 = sphi 0, %s220
    %s238 = sphi 0, %s238
    %s240 = sphi 0, %s238
    %s241 = sphi 0, %s240
    %s255 = sphi 0, %s241
    %s259 = sphi 0, %s259
    %s261 = sphi 0, %s259
    %s262 = sphi 0, %s261
    %s276 = sphi 0, %s262
    %s284 = sphi 0, %s286
    %s287 = sphi 0, %s284
    %s288 = sphi 0, %s287
    %s304 = sphi 0, %s288
  $region4: #{_lambda_.1} parent=0 // loop_header_branch
    %20 = sbr.rel (%p18) target = $region8
  $region5: #{_lambda_.1} parent=0 // loop_body
    %s22 = ssub.s32 %s17, 1
    %s23 = ssub.s32 %s17, 2
    %s30 = sadd.s32 1, %s25
    %p31 = scmp.ge.s32.totalorder %s30, 2
    %s32 = scalar_select %p31, 0, %s30
    %s33 = sadd.s32 1, %s24
    %s34 = scalar_select %p31, %s33, %s24
    %p35 = scmp.ge.s32.totalorder %s34, 2
    %s36 = scalar_select %p35, 0, %s34
    %s37 = ssub.s32 %s24, %s36
    %s38 = ssub.s32 %s25, %s32
    %s39 = sor.u32 %s37, %s38
    %p40 = scmp.eq.s32.totalorder %s39, 0
    %s42 = sadd.s32 %s41, 1
    %s43 = scalar_select %p40, %s41, %s42
    %p46 = pneg %p40
    %p47 = scmp.eq.s32.totalorder %s17, 3
    %p48 = por %p46, %p47
    %p49 = scmp.ne.s32.totalorder %s41, %s44
    %p50 = scmp.eq.s32.totalorder %s17, 0
    %p51 = por %p49, %p50
    %p52 = scmp.ne.s32.totalorder %s41, %s44
    %p53 = scmp.eq.s32.totalorder %s22, 3
    %p54 = por %p52, %p53
    %p55 = scmp.ne.s32.totalorder %s44, %s45
    %p56 = scmp.eq.s32.totalorder %s22, 0
    %p57 = por %p55, %p56
    %p58 = scmp.ne.s32.totalorder %s44, %s45
    %p59 = scmp.eq.s32.totalorder %s23, 3
    %p60 = por %p58, %p59
    %p62 = scmp.ne.s32.totalorder %s45, %s61
    %p63 = scmp.eq.s32.totalorder %s23, 0
    %p64 = por %p62, %p63
    %s65 = ssub.s32 %s24, %s36
    %p66 = scmp.eq.s32.totalorder %s65, 0
    %s68 = sadd.s32 %s67, 1
    %s69 = scalar_select %p66, %s67, %s68
    %p72 = pneg %p66
    %p73 = scmp.eq.s32.totalorder %s17, 3
    %p74 = por %p72, %p73
    %p75 = scmp.ne.s32.totalorder %s67, %s70
    %p76 = scmp.eq.s32.totalorder %s17, 0
    %p77 = por %p75, %p76
    %p78 = scmp.ne.s32.totalorder %s67, %s70
    %p79 = scmp.eq.s32.totalorder %s22, 3
    %p80 = por %p78, %p79
    %p81 = scmp.ne.s32.totalorder %s70, %s71
    %p82 = scmp.eq.s32.totalorder %s22, 0
    %p83 = por %p81, %p82
    %p84 = scmp.ne.s32.totalorder %s70, %s71
    %p85 = scmp.eq.s32.totalorder %s23, 3
    %p86 = por %p84, %p85
    %p88 = scmp.ne.s32.totalorder %s71, %s87
    %p89 = scmp.eq.s32.totalorder %s23, 0
    %p90 = por %p88, %p89
    %s92 = sadd.s32 %s91, 1
    %p95 = scmp.eq.s32.totalorder %s17, 3
    %p96 = scmp.ne.s32.totalorder %s91, %s93
    %p97 = scmp.eq.s32.totalorder %s17, 0
    %p98 = por %p96, %p97
    %p99 = scmp.ne.s32.totalorder %s91, %s93
    %p100 = scmp.eq.s32.totalorder %s22, 3
    %p101 = por %p99, %p100
    %p102 = scmp.ne.s32.totalorder %s93, %s94
    %p103 = scmp.eq.s32.totalorder %s22, 0
    %p104 = por %p102, %p103
    %p105 = scmp.ne.s32.totalorder %s93, %s94
    %p106 = scmp.eq.s32.totalorder %s23, 3
    %p107 = por %p105, %p106
    %p109 = scmp.ne.s32.totalorder %s94, %s108
    %p110 = scmp.eq.s32.totalorder %s23, 0
    %p111 = por %p109, %p110
    %s113 = sadd.s32 %s112, 1
    %p116 = scmp.eq.s32.totalorder %s17, 3
    %p117 = scmp.ne.s32.totalorder %s112, %s114
    %p118 = scmp.eq.s32.totalorder %s17, 0
    %p119 = por %p117, %p118
    %p120 = scmp.ne.s32.totalorder %s112, %s114
    %p121 = scmp.eq.s32.totalorder %s22, 3
    %p122 = por %p120, %p121
    %p123 = scmp.ne.s32.totalorder %s114, %s115
    %p124 = scmp.eq.s32.totalorder %s22, 0
    %p125 = por %p123, %p124
    %p126 = scmp.ne.s32.totalorder %s114, %s115
    %p127 = scmp.eq.s32.totalorder %s23, 3
    %p128 = por %p126, %p127
    %p130 = scmp.ne.s32.totalorder %s115, %s129
    %p131 = scmp.eq.s32.totalorder %s23, 0
    %p132 = por %p130, %p131
    %s134 = sadd.s32 %s133, 1
    %p137 = scmp.eq.s32.totalorder %s17, 3
    %p138 = scmp.ne.s32.totalorder %s133, %s135
    %p139 = scmp.eq.s32.totalorder %s17, 0
    %p140 = por %p138, %p139
    %p141 = scmp.ne.s32.totalorder %s133, %s135
    %p142 = scmp.eq.s32.totalorder %s22, 3
    %p143 = por %p141, %p142
    %p144 = scmp.ne.s32.totalorder %s135, %s136
    %p145 = scmp.eq.s32.totalorder %s22, 0
    %p146 = por %p144, %p145
    %p147 = scmp.ne.s32.totalorder %s135, %s136
    %p148 = scmp.eq.s32.totalorder %s23, 3
    %p149 = por %p147, %p148
    %p151 = scmp.ne.s32.totalorder %s136, %s150
    %p152 = scmp.eq.s32.totalorder %s23, 0
    %p153 = por %p151, %p152
    %s155 = sadd.s32 %s154, 1
    %p158 = scmp.eq.s32.totalorder %s17, 3
    %p159 = scmp.ne.s32.totalorder %s154, %s156
    %p160 = scmp.eq.s32.totalorder %s17, 0
    %p161 = por %p159, %p160
    %p162 = scmp.ne.s32.totalorder %s154, %s156
    %p163 = scmp.eq.s32.totalorder %s22, 3
    %p164 = por %p162, %p163
    %p165 = scmp.ne.s32.totalorder %s156, %s157
    %p166 = scmp.eq.s32.totalorder %s22, 0
    %p167 = por %p165, %p166
    %p168 = scmp.ne.s32.totalorder %s156, %s157
    %p169 = scmp.eq.s32.totalorder %s23, 3
    %p170 = por %p168, %p169
    %p172 = scmp.ne.s32.totalorder %s157, %s171
    %p173 = scmp.eq.s32.totalorder %s23, 0
    %p174 = por %p172, %p173
    %s176 = sadd.s32 %s175, 1
    %p179 = scmp.eq.s32.totalorder %s17, 3
    %p180 = scmp.ne.s32.totalorder %s175, %s177
    %p181 = scmp.eq.s32.totalorder %s17, 0
    %p182 = por %p180, %p181
    %p183 = scmp.ne.s32.totalorder %s175, %s177
    %p184 = scmp.eq.s32.totalorder %s22, 3
    %p185 = por %p183, %p184
    %p186 = scmp.ne.s32.totalorder %s177, %s178
    %p187 = scmp.eq.s32.totalorder %s22, 0
    %p188 = por %p186, %p187
    %p189 = scmp.ne.s32.totalorder %s177, %s178
    %p190 = scmp.eq.s32.totalorder %s23, 3
    %p191 = por %p189, %p190
    %p193 = scmp.ne.s32.totalorder %s178, %s192
    %p194 = scmp.eq.s32.totalorder %s23, 0
    %p195 = por %p193, %p194
    %s197 = sadd.s32 %s196, 1
    %p200 = scmp.eq.s32.totalorder %s17, 3
    %p201 = scmp.ne.s32.totalorder %s196, %s198
    %p202 = scmp.eq.s32.totalorder %s17, 0
    %p203 = por %p201, %p202
    %p204 = scmp.ne.s32.totalorder %s196, %s198
    %p205 = scmp.eq.s32.totalorder %s22, 3
    %p206 = por %p204, %p205
    %p207 = scmp.ne.s32.totalorder %s198, %s199
    %p208 = scmp.eq.s32.totalorder %s22, 0
    %p209 = por %p207, %p208
    %p210 = scmp.ne.s32.totalorder %s198, %s199
    %p211 = scmp.eq.s32.totalorder %s23, 3
    %p212 = por %p210, %p211
    %p214 = scmp.ne.s32.totalorder %s199, %s213
    %p215 = scmp.eq.s32.totalorder %s23, 0
    %p216 = por %p214, %p215
    %s218 = sadd.s32 %s217, 1
    %p221 = scmp.eq.s32.totalorder %s17, 3
    %p222 = scmp.ne.s32.totalorder %s217, %s219
    %p223 = scmp.eq.s32.totalorder %s17, 0
    %p224 = por %p222, %p223
    %p225 = scmp.ne.s32.totalorder %s217, %s219
    %p226 = scmp.eq.s32.totalorder %s22, 3
    %p227 = por %p225, %p226
    %p228 = scmp.ne.s32.totalorder %s219, %s220
    %p229 = scmp.eq.s32.totalorder %s22, 0
    %p230 = por %p228, %p229
    %p231 = scmp.ne.s32.totalorder %s219, %s220
    %p232 = scmp.eq.s32.totalorder %s23, 3
    %p233 = por %p231, %p232
    %p235 = scmp.ne.s32.totalorder %s220, %s234
    %p236 = scmp.eq.s32.totalorder %s23, 0
    %p237 = por %p235, %p236
    %s239 = sadd.s32 %s238, 1
    %p242 = scmp.eq.s32.totalorder %s17, 3
    %p243 = scmp.ne.s32.totalorder %s238, %s240
    %p244 = scmp.eq.s32.totalorder %s17, 0
    %p245 = por %p243, %p244
    %p246 = scmp.ne.s32.totalorder %s238, %s240
    %p247 = scmp.eq.s32.totalorder %s22, 3
    %p248 = por %p246, %p247
    %p249 = scmp.ne.s32.totalorder %s240, %s241
    %p250 = scmp.eq.s32.totalorder %s22, 0
    %p251 = por %p249, %p250
    %p252 = scmp.ne.s32.totalorder %s240, %s241
    %p253 = scmp.eq.s32.totalorder %s23, 3
    %p254 = por %p252, %p253
    %p256 = scmp.ne.s32.totalorder %s241, %s255
    %p257 = scmp.eq.s32.totalorder %s23, 0
    %p258 = por %p256, %p257
    %s260 = sadd.s32 %s259, 1
    %p263 = scmp.eq.s32.totalorder %s17, 3
    %p264 = scmp.ne.s32.totalorder %s259, %s261
    %p265 = scmp.eq.s32.totalorder %s17, 0
    %p266 = por %p264, %p265
    %p267 = scmp.ne.s32.totalorder %s259, %s261
    %p268 = scmp.eq.s32.totalorder %s22, 3
    %p269 = por %p267, %p268
    %p270 = scmp.ne.s32.totalorder %s261, %s262
    %p271 = scmp.eq.s32.totalorder %s22, 0
    %p272 = por %p270, %p271
    %p273 = scmp.ne.s32.totalorder %s261, %s262
    %p274 = scmp.eq.s32.totalorder %s23, 3
    %p275 = por %p273, %p274
    %p277 = scmp.ne.s32.totalorder %s262, %s276
    %p278 = scmp.eq.s32.totalorder %s23, 0
    %p279 = por %p277, %p278
    %s280 = ssub.s32 %s24, %s36
    %s281 = ssub.s32 %s25, %s32
    %s282 = sor.u32 %s280, %s281
    %p283 = scmp.eq.s32.totalorder %s282, 0
    %s285 = sadd.s32 %s284, 1
    %s286 = scalar_select %p283, %s284, %s285
    %p289 = pneg %p283
    %p290 = scmp.eq.s32.totalorder %s17, 3
    %p291 = por %p289, %p290
    %p292 = scmp.ne.s32.totalorder %s284, %s287
    %p293 = scmp.eq.s32.totalorder %s17, 0
    %p294 = por %p292, %p293
    %p295 = scmp.ne.s32.totalorder %s284, %s287
    %p296 = scmp.eq.s32.totalorder %s22, 3
    %p297 = por %p295, %p296
    %p298 = scmp.ne.s32.totalorder %s287, %s288
    %p299 = scmp.eq.s32.totalorder %s22, 0
    %p300 = por %p298, %p299
    %p301 = scmp.ne.s32.totalorder %s287, %s288
    %p302 = scmp.eq.s32.totalorder %s23, 3
    %p303 = por %p301, %p302
    %p305 = scmp.ne.s32.totalorder %s288, %s304
    %p306 = scmp.eq.s32.totalorder %s23, 0
    %p307 = por %p305, %p306
    %p308 = scmp.le.s32.totalorder 1, %s17
    %p309 = scmp.lt.s32.totalorder %s17, 5
    %p310 = pnand %p308, %p309
    %p311 = pneg %p310
    // Predicated region
    $region9: #{_lambda_.1} parent=5 // pred_check
      _
    $region10: #{_lambda_.1} parent=5 // pred_check_branch
      %313 = sbr.rel (%p310) target = $region12
    $region11: #{_lambda_.1} parent=5 // pred_region
      %s314 = ssub.s32 %s17, 1
      // Predicated region
      $region13: #{_lambda_.1} parent=11 // pred_check
        %p315 = pneg %p104
      $region14: #{_lambda_.1} parent=11 // pred_check_branch
        %317 = sbr.rel (%p315) target = $region16
      $region15: #{_lambda_.1} parent=11 // pred_region
        _
      $region16: #{_lambda_.1} parent=11 // pred_fallthru
        _
      // Predicated region
      $region17: #{_lambda_.1} parent=11 // pred_check
        %p318 = pneg %p125
      $region18: #{_lambda_.1} parent=11 // pred_check_branch
        %320 = sbr.rel (%p318) target = $region20
      $region19: #{_lambda_.1} parent=11 // pred_region
        _
      $region20: #{_lambda_.1} parent=11 // pred_fallthru
        _
      // Predicated region
      $region21: #{_lambda_.1} parent=11 // pred_check
        %p321 = pneg %p146
      $region22: #{_lambda_.1} parent=11 // pred_check_branch
        %323 = sbr.rel (%p321) target = $region24
      $region23: #{_lambda_.1} parent=11 // pred_region
        _
      $region24: #{_lambda_.1} parent=11 // pred_fallthru
        _
      // Predicated region
      $region25: #{_lambda_.1} parent=11 // pred_check
        %p324 = pneg %p167
      $region26: #{_lambda_.1} parent=11 // pred_check_branch
        %326 = sbr.rel (%p324) target = $region28
      $region27: #{_lambda_.1} parent=11 // pred_region
        _
      $region28: #{_lambda_.1} parent=11 // pred_fallthru
        _
      // Predicated region
      $region29: #{_lambda_.1} parent=11 // pred_check
        %p327 = pneg %p188
      $region30: #{_lambda_.1} parent=11 // pred_check_branch
        %329 = sbr.rel (%p327) target = $region32
      $region31: #{_lambda_.1} parent=11 // pred_region
        _
      $region32: #{_lambda_.1} parent=11 // pred_fallthru
        _
      // Predicated region
      $region33: #{_lambda_.1} parent=11 // pred_check
        %p330 = pneg %p209
      $region34: #{_lambda_.1} parent=11 // pred_check_branch
        %332 = sbr.rel (%p330) target = $region36
      $region35: #{_lambda_.1} parent=11 // pred_region
        _
      $region36: #{_lambda_.1} parent=11 // pred_fallthru
        _
      // Predicated region
      $region37: #{_lambda_.1} parent=11 // pred_check
        %p333 = pneg %p230
      $region38: #{_lambda_.1} parent=11 // pred_check_branch
        %335 = sbr.rel (%p333) target = $region40
      $region39: #{_lambda_.1} parent=11 // pred_region
        _
      $region40: #{_lambda_.1} parent=11 // pred_fallthru
        _
      // Predicated region
      $region41: #{_lambda_.1} parent=11 // pred_check
        %p336 = pneg %p251
      $region42: #{_lambda_.1} parent=11 // pred_check_branch
        %338 = sbr.rel (%p336) target = $region44
      $region43: #{_lambda_.1} parent=11 // pred_region
        _
      $region44: #{_lambda_.1} parent=11 // pred_fallthru
        _
      // Predicated region
      $region45: #{_lambda_.1} parent=11 // pred_check
        %p339 = pneg %p272
      $region46: #{_lambda_.1} parent=11 // pred_check_branch
        %341 = sbr.rel (%p339) target = $region48
      $region47: #{_lambda_.1} parent=11 // pred_region
        _
      $region48: #{_lambda_.1} parent=11 // pred_fallthru
        _
    $region12: #{_lambda_.1} parent=5 // pred_fallthru
      _
    %p342 = scmp.lt.s32.totalorder %s17, 4
    // Predicated region
    $region49: #{_lambda_.1} parent=5 // pred_check
      %p343 = pneg %p342
    $region50: #{_lambda_.1} parent=5 // pred_check_branch
      %345 = sbr.rel (%p343) target = $region52
    $region51: #{_lambda_.1} parent=5 // pred_region
      // Predicated region
      $region53: #{_lambda_.1} parent=51 // pred_check
        %p346 = pneg %p51
      $region54: #{_lambda_.1} parent=51 // pred_check_branch
        %348 = sbr.rel (%p346) target = $region56
      $region55: #{_lambda_.1} parent=51 // pred_region
        %s349 = smul.u32 4, %s25
        %p350 = scmp.lt.s32.totalorder %s24, 1
        %s351 = scalar_select %p350, %s24, 1
        %p352 = scmp.lt.s32.totalorder %s349, 7
        %s353 = scalar_select %p352, %s349, 7
        %s354 = smul.addr %s351, 8
        %s355 = sadd.s32 %s353, %s354
        %s356 = smul.addr %s355, 4
        %s357 = scalar_lea.vmem %s0, %s356
        %s358 = smul.u32 4, %s25
      $region56: #{_lambda_.1} parent=51 // pred_fallthru
        _
      // Predicated region
      $region57: #{_lambda_.1} parent=51 // pred_check
        %p359 = pneg %p77
      $region58: #{_lambda_.1} parent=51 // pred_check_branch
        %361 = sbr.rel (%p359) target = $region60
      $region59: #{_lambda_.1} parent=51 // pred_region
        %p362 = scmp.lt.s32.totalorder %s24, 1
        %s363 = scalar_select %p362, %s24, 1
        %s364 = smul.addr %s363, 2
        %s365 = smul.addr %s364, 4
        %s366 = scalar_lea.vmem %s1, %s365
      $region60: #{_lambda_.1} parent=51 // pred_fallthru
        _
    $region52: #{_lambda_.1} parent=5 // pred_fallthru
      _
    %p367 = scmp.le.s32.totalorder 1, %s17
    %p368 = scmp.lt.s32.totalorder %s17, 5
    %p369 = pnand %p367, %p368
    %p370 = pneg %p369
    // Predicated region
    $region61: #{_lambda_.1} parent=5 // pred_check
      _
    $region62: #{_lambda_.1} parent=5 // pred_check_branch
      %372 = sbr.rel (%p369) target = $region64
    $region63: #{_lambda_.1} parent=5 // pred_region
      %s373 = ssub.s32 %s17, 1
      %s374 = smul.u32 4, %s27
      %p375 = scmp.lt.s32.totalorder %s26, 1
      %s376 = scalar_select %p375, %s26, 1
      %p377 = scmp.lt.s32.totalorder %s374, 7
      %s378 = scalar_select %p377, %s374, 7
      %s379 = smul.addr %s376, 8
      %s380 = sadd.s32 %s378, %s379
      %s381 = smul.addr %s380, 4
      %s382 = scalar_lea.vmem %s0, %s381
      %p383 = pneg %p57
      %p384 = pneg %p54
      %p385 = scmp.lt.s32.totalorder %s26, 1
      %s386 = scalar_select %p385, %s26, 1
      %s387 = smul.addr %s386, 2
      %s388 = smul.addr %s387, 4
      %s389 = scalar_lea.vmem %s1, %s388
      %p390 = pneg %p83
      %p391 = pneg %p80
      %p392 = pneg %p104
      %p393 = pneg %p101
      %p394 = pneg %p125
      %p395 = pneg %p122
      %p396 = pneg %p146
      %p397 = pneg %p143
      %p398 = pneg %p167
      %p399 = pneg %p164
      %p400 = pneg %p188
      %p401 = pneg %p185
      %p402 = pneg %p209
      %p403 = pneg %p206
      %p404 = pneg %p230
      %p405 = pneg %p227
      %p406 = pneg %p251
      %p407 = pneg %p248
      %p408 = pneg %p272
      %p409 = pneg %p269
      %p410 = pneg %p300
      %p411 = pneg %p297
      %s412 = smul.u32 4, %s27
      %p413 = scmp.lt.s32.totalorder %s26, 1
      %s414 = scalar_select %p413, %s26, 1
      %p415 = scmp.lt.s32.totalorder %s412, 7
      %s416 = scalar_select %p415, %s412, 7
      %s417 = smul.addr %s414, 8
      %s418 = sadd.s32 %s416, %s417
      %s419 = smul.addr %s418, 8
      %s420 = scalar_lea.vmem %s11, %s419
      %s421 = smul.u32 4, %s27
      %p422 = scmp.lt.s32.totalorder %s26, 1
      %s423 = scalar_select %p422, %s26, 1
      %p424 = scmp.lt.s32.totalorder %s421, 7
      %s425 = scalar_select %p424, %s421, 7
      %s426 = smul.addr %s423, 8
      %s427 = sadd.s32 %s425, %s426
      %s428 = smul.addr %s427, 4
      %s429 = scalar_lea.vmem %s0, %s428
      %s430 = smul.u32 4, %s27
      %p431 = scmp.lt.s32.totalorder %s26, 1
      %s432 = scalar_select %p431, %s26, 1
      %s433 = smul.addr %s432, 2
      %s434 = smul.addr %s433, 4
      %s435 = scalar_lea.vmem %s1, %s434
      %s436 = smul.u32 4, %s27
      %p437 = scmp.lt.s32.totalorder %s26, 1
      %s438 = scalar_select %p437, %s26, 1
      %p439 = scmp.lt.s32.totalorder %s436, 7
      %s440 = scalar_select %p439, %s436, 7
      %s441 = smul.addr %s438, 8
      %s442 = sadd.s32 %s440, %s441
      %s443 = smul.addr %s442, 8
      %s444 = scalar_lea.vmem %s11, %s443
      %s445 = smul.u32 4, %s27
      %p447 = scmp.eq.s32.totalorder %s27, 0
      // Predicated region
      $region65: #{_lambda_.1} parent=63 // pred_check
        %p448 = pneg %p447
      $region66: #{_lambda_.1} parent=63 // pred_check_branch
        %450 = sbr.rel (%p448) target = $region68
      $region67: #{_lambda_.1} parent=63 // pred_region
        %v451 = vld [vmem:[%s435] sm:$0xf]
        %v452 = vld [vmem:[%s435 + $0x4] sm:$0xf]
        %v453 = vld [vmem:[%s3] sm:$0xf]
        %v454 = vld [vmem:[%s3 + $0x4] sm:$0xf]
        %v455 = vld [vmem:[%s3 + $0x8] sm:$0xf]
        %v456 = vld [vmem:[%s3 + $0xc] sm:$0xf]
        %v457 = vld [vmem:[%s3 + $0x10] sm:$0xf]
        %v458 = vld [vmem:[%s3 + $0x14] sm:$0xf]
        %v459 = vld [vmem:[%s3 + $0x18] sm:$0xf]
        %v460 = vld [vmem:[%s3 + $0x1c] sm:$0xf]
        %v461 = vld [vmem:[%s3 + $0x20] sm:$0xf]
        %v462 = vld [vmem:[%s3 + $0x24] sm:$0xf]
        %v463 = vld [vmem:[%s3 + $0x28] sm:$0xf]
        %v464 = vld [vmem:[%s3 + $0x2c] sm:$0xf]
        %v465 = vld [vmem:[%s3 + $0x30] sm:$0xf]
        %v466 = vld [vmem:[%s3 + $0x34] sm:$0xf]
        %v467 = vld [vmem:[%s3 + $0x38] sm:$0xf]
        %v468 = vld [vmem:[%s3 + $0x3c] sm:$0xf]
        %v469 = vld [vmem:[%s4] sm:$0x1]
        %v471 = vlaneseq
        %v472 = vshrl.u32 %v471, 7
        %v473 = vsub.s32 0, %v472
        %v474 = vrot.slane %v469, %v473
        %v478 = vunpack.c.l.b16 %v451
        %v479 = vunpack.c.l.b16 %v452
        %v480 = vpack.c.b16 %v479, %v478
        %v498 = vunpack.c.l.b16 %v453
        %v499 = vunpack.c.l.b16 %v454
        %v500 = vunpack.c.l.b16 %v455
        %v501 = vunpack.c.l.b16 %v456
        %v502 = vunpack.c.l.b16 %v457
        %v503 = vunpack.c.l.b16 %v458
        %v504 = vunpack.c.l.b16 %v459
        %v505 = vunpack.c.l.b16 %v460
        %v506 = vunpack.c.l.b16 %v461
        %v507 = vunpack.c.l.b16 %v462
        %v508 = vunpack.c.l.b16 %v463
        %v509 = vunpack.c.l.b16 %v464
        %v510 = vunpack.c.l.b16 %v465
        %v511 = vunpack.c.l.b16 %v466
        %v512 = vunpack.c.l.b16 %v467
        %v513 = vunpack.c.l.b16 %v468
        %v514 = vpack.c.b16 %v499, %v498
        %v515 = vpack.c.b16 %v501, %v500
        %v516 = vpack.c.b16 %v503, %v502
        %v517 = vpack.c.b16 %v505, %v504
        %v518 = vpack.c.b16 %v507, %v506
        %v519 = vpack.c.b16 %v509, %v508
        %v520 = vpack.c.b16 %v511, %v510
        %v521 = vpack.c.b16 %v513, %v512
        %530 = vmatprep.subr.bf16.mxu0 0
        %531 = vmatpush1.bf16.msra.mxu0 %v521
        %532 = vmatprep.subr.bf16.mxu0 0
        %533 = vmatpush1.bf16.msra.mxu0 %v520
        %534 = vmatprep.subr.bf16.mxu0 0
        %535 = vmatpush1.bf16.msra.mxu0 %v519
        %536 = vmatprep.subr.bf16.mxu0 0
        %537 = vmatpush1.bf16.msra.mxu0 %v518
        %538 = vmatprep.subr.bf16.mxu0 0
        %539 = vmatpush1.bf16.msra.mxu0 %v517
        %540 = vmatprep.subr.bf16.mxu0 0
        %541 = vmatpush1.bf16.msra.mxu0 %v516
        %542 = vmatprep.subr.bf16.mxu0 0
        %543 = vmatpush1.bf16.msra.mxu0 %v515
        %544 = vmatprep.subr.bf16.mxu0 0
        %545 = vmatpush1.bf16.msra.mxu0 %v514
        %546 = vmatprep.subr.bf16.mxu0 0
        %547 = vmatpush2.bf16.msra.mxu0 0
        %548 = vmatprep.subr.bf16.mxu0 0
        %549 = vmatpush2.bf16.msra.mxu0 0
        %550 = vmatprep.subr.bf16.mxu0 0
        %551 = vmatpush2.bf16.msra.mxu0 0
        %552 = vmatprep.subr.bf16.mxu0 0
        %553 = vmatpush2.bf16.msra.mxu0 0
        %554 = vmatprep.subr.bf16.mxu0 0
        %555 = vmatpush2.bf16.msra.mxu0 0
        %556 = vmatprep.subr.bf16.mxu0 0
        %557 = vmatpush2.bf16.msra.mxu0 0
        %558 = vmatprep.subr.bf16.mxu0 0
        %559 = vmatpush2.bf16.msra.mxu0 0
        %560 = vmatprep.subr.bf16.mxu0 0
        %561 = vmatpush2.bf16.msra.mxu0 0
        %562 = vmatprep.mubr.bf16.mxu0 0
        %563 = vmatmul.mubr.bf16.gmra.mxu0 %v480
        %v564 = vpop.f32.mrf.mxu0
        %v565 = vadd.f32 %v474, %v564
        %v566 = vpop.f32.mrf.mxu0
        %v567 = vpop.f32.mrf.mxu0
        %v568 = vadd.f32 %v474, %v567
        %v569 = vpop.f32.mrf.mxu0
        %570 = vdwg.mxu0
        %v571 = vld [vmem:[%s5] sm:$0x1]
        %v572 = vld [vmem:[%s6] sm:$0x1]
        %vm573 = vcmask 261120
        %v574 = vsel %vm573, %v565, 0.0
        %575 = vadd.xlane.f32.xlu0 %v574
        %v576 = vpop.xlane.xlu0 %575
        %v577 = vsel %vm573, %v568, 0.0
        %578 = vadd.xlane.f32.xlu0 %v577
        %v579 = vpop.xlane.xlu0 %578
        %v580 = vrcp.pop 32.0
        %v581 = vmul.f32 %v576, %v580
        %v582 = vmul.f32 %v579, %v580
        %v583 = vsub.f32 %v565, %v581
        %v584 = vsub.f32 %v568, %v582
        %v585 = vmul.f32 %v583, %v583
        %v586 = vmul.f32 %v584, %v584
        %v587 = vsel %vm573, %v585, 0.0
        %588 = vadd.xlane.f32.xlu0 %v587
        %v589 = vpop.xlane.xlu0 %588
        %v590 = vsel %vm573, %v586, 0.0
        %591 = vadd.xlane.f32.xlu0 %v590
        %v592 = vpop.xlane.xlu0 %591
        %v593 = vmul.f32 %v589, %v580
        %v594 = vmul.f32 %v592, %v580
        %v595 = vadd.f32 %v593, 1e-05
        %v596 = vadd.f32 %v594, 1e-05
        %v597 = vrsqrt.pop %v595
        %v598 = vrsqrt.pop %v596
        %v599 = vmul.f32 %v583, %v597
        %v600 = vmul.f32 %v584, %v598
        %v602 = vlaneseq
        %v603 = vshrl.u32 %v602, 7
        %v604 = vsub.s32 0, %v603
        %v605 = vrot.slane %v571, %v604
        %v607 = vmul.f32 %v599, %v605
        %v608 = vmul.f32 %v600, %v605
        %v610 = vlaneseq
        %v611 = vshrl.u32 %v610, 7
        %v612 = vsub.s32 0, %v611
        %v613 = vrot.slane %v572, %v612
        %v615 = vadd.f32 %v607, %v613
        %v616 = vadd.f32 %v608, %v613
        %v617 = vpack.c.bf16 %v616, %v615
        %v618 = vld [vmem:[%s7] sm:$0xf]
        %v619 = vld [vmem:[%s7 + $0x4] sm:$0xf]
        %v620 = vld [vmem:[%s7 + $0x8] sm:$0xf]
        %v621 = vld [vmem:[%s7 + $0xc] sm:$0xf]
        %v626 = vunpack.c.l.b16 %v618
        %v627 = vunpack.c.l.b16 %v619
        %v628 = vunpack.c.l.b16 %v620
        %v629 = vunpack.c.l.b16 %v621
        %v630 = vpack.c.b16 %v627, %v626
        %v631 = vpack.c.b16 %v629, %v628
        %v635 = vsel %vm573, %v617, 0
        %637 = vmatprep.subr.bf16.mxu0 0
        %638 = vmatpush1.bf16.msra.mxu0 0
        %639 = vmatprep.subr.bf16.mxu0 0
        %640 = vmatpush1.bf16.msra.mxu0 0
        %641 = vmatprep.subr.bf16.mxu0 0
        %642 = vmatpush1.bf16.msra.mxu0 0
        %643 = vmatprep.subr.bf16.mxu0 0
        %644 = vmatpush1.bf16.msra.mxu0 0
        %645 = vmatprep.subr.bf16.mxu0 0
        %646 = vmatpush1.bf16.msra.mxu0 0
        %647 = vmatprep.subr.bf16.mxu0 0
        %648 = vmatpush1.bf16.msra.mxu0 0
        %649 = vmatprep.subr.bf16.mxu0 0
        %650 = vmatpush1.bf16.msra.mxu0 %v631
        %651 = vmatprep.subr.bf16.mxu0 0
        %652 = vmatpush1.bf16.msra.mxu0 %v630
        %653 = vmatprep.subr.bf16.mxu0 0
        %654 = vmatpush2.bf16.msra.mxu0 0
        %655 = vmatprep.subr.bf16.mxu0 0
        %656 = vmatpush2.bf16.msra.mxu0 0
        %657 = vmatprep.subr.bf16.mxu0 0
        %658 = vmatpush2.bf16.msra.mxu0 0
        %659 = vmatprep.subr.bf16.mxu0 0
        %660 = vmatpush2.bf16.msra.mxu0 0
        %661 = vmatprep.subr.bf16.mxu0 0
        %662 = vmatpush2.bf16.msra.mxu0 0
        %663 = vmatprep.subr.bf16.mxu0 0
        %664 = vmatpush2.bf16.msra.mxu0 0
        %665 = vmatprep.subr.bf16.mxu0 0
        %666 = vmatpush2.bf16.msra.mxu0 0
        %667 = vmatprep.subr.bf16.mxu0 0
        %668 = vmatpush2.bf16.msra.mxu0 0
        %669 = vmatprep.mubr.bf16.mxu0 0
        %670 = vmatmul.mubr.bf16.gmra.mxu0 %v635
        %v671 = vpop.f32.mrf.mxu0
        %v672 = vadd.f32 0.0, %v671
        %v673 = vpop.f32.mrf.mxu0
        %v674 = vpop.f32.mrf.mxu0
        %v675 = vadd.f32 0.0, %v674
        %v676 = vpop.f32.mrf.mxu0
        %677 = vdwg.mxu0
        %v678 = vpack.c.bf16 %v675, %v672
        %v680 = vunpack.c.l.b16 %v678
        %v681 = vunpack.c.h.b16 %v678
        %v682 = vpack.c.b16 %v680, %v680
        %v683 = vpack.c.b16 %v681, %v681
        %vm686 = vcmask 257024
        %687 = vst.msk [vmem:[#allocation2] sm:$0xf] %vm686, %v682
        %688 = vst.msk [vmem:[#allocation2 + $0x4] sm:$0xf] %vm686, %v683
        %v689 = vld [vmem:[%s8] sm:$0xf]
        %v690 = vld [vmem:[%s8 + $0x4] sm:$0xf]
        %v691 = vld [vmem:[%s8 + $0x8] sm:$0xf]
        %v692 = vld [vmem:[%s8 + $0xc] sm:$0xf]
        %v697 = vunpack.c.l.b16 %v689
        %v698 = vunpack.c.l.b16 %v690
        %v699 = vunpack.c.l.b16 %v691
        %v700 = vunpack.c.l.b16 %v692
        %v701 = vpack.c.b16 %v698, %v697
        %v702 = vpack.c.b16 %v700, %v699
        %705 = vmatprep.subr.bf16.mxu0 0
        %706 = vmatpush1.bf16.msra.mxu0 0
        %707 = vmatprep.subr.bf16.mxu0 0
        %708 = vmatpush1.bf16.msra.mxu0 0
        %709 = vmatprep.subr.bf16.mxu0 0
        %710 = vmatpush1.bf16.msra.mxu0 0
        %711 = vmatprep.subr.bf16.mxu0 0
        %712 = vmatpush1.bf16.msra.mxu0 0
        %713 = vmatprep.subr.bf16.mxu0 0
        %714 = vmatpush1.bf16.msra.mxu0 0
        %715 = vmatprep.subr.bf16.mxu0 0
        %716 = vmatpush1.bf16.msra.mxu0 0
        %717 = vmatprep.subr.bf16.mxu0 0
        %718 = vmatpush1.bf16.msra.mxu0 %v702
        %719 = vmatprep.subr.bf16.mxu0 0
        %720 = vmatpush1.bf16.msra.mxu0 %v701
        %721 = vmatprep.subr.bf16.mxu0 0
        %722 = vmatpush2.bf16.msra.mxu0 0
        %723 = vmatprep.subr.bf16.mxu0 0
        %724 = vmatpush2.bf16.msra.mxu0 0
        %725 = vmatprep.subr.bf16.mxu0 0
        %726 = vmatpush2.bf16.msra.mxu0 0
        %727 = vmatprep.subr.bf16.mxu0 0
        %728 = vmatpush2.bf16.msra.mxu0 0
        %729 = vmatprep.subr.bf16.mxu0 0
        %730 = vmatpush2.bf16.msra.mxu0 0
        %731 = vmatprep.subr.bf16.mxu0 0
        %732 = vmatpush2.bf16.msra.mxu0 0
        %733 = vmatprep.subr.bf16.mxu0 0
        %734 = vmatpush2.bf16.msra.mxu0 0
        %735 = vmatprep.subr.bf16.mxu0 0
        %736 = vmatpush2.bf16.msra.mxu0 0
        %737 = vmatprep.mubr.bf16.mxu0 0
        %738 = vmatmul.mubr.bf16.gmra.mxu0 %v635
        %v739 = vpop.f32.mrf.mxu0
        %v740 = vadd.f32 0.0, %v739
        %v741 = vpop.f32.mrf.mxu0
        %v742 = vpop.f32.mrf.mxu0
        %v743 = vadd.f32 0.0, %v742
        %v744 = vpop.f32.mrf.mxu0
        %745 = vdwg.mxu0
        %v746 = vpack.c.bf16 %v743, %v740
        %v748 = vunpack.c.l.b16 %v746
        %v749 = vunpack.c.h.b16 %v746
        %v750 = vpack.c.b16 %v748, %v748
        %v751 = vpack.c.b16 %v749, %v749
        %754 = vst.msk [vmem:[#allocation3] sm:$0xf] %vm686, %v750
        %755 = vst.msk [vmem:[#allocation3 + $0x4] sm:$0xf] %vm686, %v751
      $region68: #{_lambda_.1} parent=63 // pred_fallthru
        _
      %v756 = vld [vmem:[%s429] sm:$0xf]
      %v757 = vld [vmem:[%s429 + $0x4] sm:$0xf]
      %v758 = vld [vmem:[%s429 + $0x8] sm:$0xf]
      %v759 = vld [vmem:[%s429 + $0xc] sm:$0xf]
      %v760 = vld [vmem:[%s2] sm:$0xf]
      %v761 = vld [vmem:[%s2 + $0x4] sm:$0xf]
      %v762 = vld [vmem:[%s2 + $0x8] sm:$0xf]
      %v763 = vld [vmem:[%s2 + $0xc] sm:$0xf]
      %v768 = vunpack.c.l.b16 %v756
      %v769 = vunpack.c.l.b16 %v757
      %v770 = vunpack.c.l.b16 %v758
      %v771 = vunpack.c.l.b16 %v759
      %v772 = vpack.c.b16 %v769, %v768
      %v773 = vpack.c.b16 %v771, %v770
      %v778 = vunpack.c.l.b16 %v760
      %v779 = vunpack.c.l.b16 %v761
      %v780 = vunpack.c.l.b16 %v762
      %v781 = vunpack.c.l.b16 %v763
      %v782 = vpack.c.b16 %v779, %v778
      %v783 = vpack.c.b16 %v781, %v780
      %vm786 = vcmask 261120
      %v788 = vsel %vm786, %v772, 0
      %v791 = vsel %vm786, %v773, 0
      %793 = vmatprep.subr.bf16.mxu0 0
      %794 = vmatpush1.bf16.msra.mxu0 0
      %795 = vmatprep.subr.bf16.mxu0 0
      %796 = vmatpush1.bf16.msra.mxu0 0
      %797 = vmatprep.subr.bf16.mxu0 0
      %798 = vmatpush1.bf16.msra.mxu0 0
      %799 = vmatprep.subr.bf16.mxu0 0
      %800 = vmatpush1.bf16.msra.mxu0 0
      %801 = vmatprep.subr.bf16.mxu0 0
      %802 = vmatpush1.bf16.msra.mxu0 0
      %803 = vmatprep.subr.bf16.mxu0 0
      %804 = vmatpush1.bf16.msra.mxu0 0
      %805 = vmatprep.subr.bf16.mxu0 0
      %806 = vmatpush1.bf16.msra.mxu0 %v783
      %807 = vmatprep.subr.bf16.mxu0 0
      %808 = vmatpush1.bf16.msra.mxu0 %v782
      %809 = vmatprep.subr.bf16.mxu0 0
      %810 = vmatpush2.bf16.msra.mxu0 0
      %811 = vmatprep.subr.bf16.mxu0 0
      %812 = vmatpush2.bf16.msra.mxu0 0
      %813 = vmatprep.subr.bf16.mxu0 0
      %814 = vmatpush2.bf16.msra.mxu0 0
      %815 = vmatprep.subr.bf16.mxu0 0
      %816 = vmatpush2.bf16.msra.mxu0 0
      %817 = vmatprep.subr.bf16.mxu0 0
      %818 = vmatpush2.bf16.msra.mxu0 0
      %819 = vmatprep.subr.bf16.mxu0 0
      %820 = vmatpush2.bf16.msra.mxu0 0
      %821 = vmatprep.subr.bf16.mxu0 0
      %822 = vmatpush2.bf16.msra.mxu0 0
      %823 = vmatprep.subr.bf16.mxu0 0
      %824 = vmatpush2.bf16.msra.mxu0 0
      %825 = vmatprep.mubr.bf16.mxu0 0
      %826 = vmatmul.mubr.bf16.gmra.mxu0 %v788
      %v827 = vpop.f32.mrf.mxu0
      %v828 = vadd.f32 0.0, %v827
      %v829 = vpop.f32.mrf.mxu0
      %v830 = vpop.f32.mrf.mxu0
      %v831 = vadd.f32 0.0, %v830
      %v832 = vpop.f32.mrf.mxu0
      %833 = vmatprep.mubr.bf16.mxu0 0
      %834 = vmatmul.mubr.bf16.gmra.mxu0 %v791
      %v835 = vpop.f32.mrf.mxu0
      %v836 = vadd.f32 0.0, %v835
      %v837 = vpop.f32.mrf.mxu0
      %v838 = vpop.f32.mrf.mxu0
      %v839 = vadd.f32 0.0, %v838
      %v840 = vpop.f32.mrf.mxu0
      %841 = vdwg.mxu0
      %v842 = vmul.f32 %v828, 0.25
      %v843 = vmul.f32 %v831, 0.25
      %v844 = vmul.f32 %v836, 0.25
      %v845 = vmul.f32 %v839, 0.25
      %v846 = vld [vmem:[#allocation2] sm:$0xf]
      %v847 = vld [vmem:[#allocation2 + $0x4] sm:$0xf]
      %v848 = vld [vmem:[#allocation3] sm:$0xf]
      %v849 = vld [vmem:[#allocation3 + $0x4] sm:$0xf]
      %v850 = vpack.c.bf16 %v843, %v842
      %v851 = vpack.c.bf16 %v845, %v844
      %v854 = vunpack.c.l.b16 %v846
      %v855 = vunpack.c.l.b16 %v847
      %v856 = vpack.c.b16 %v855, %v854
      %vm857 = vcmask 130048
      %v859 = vsel %vm857, %v850, 0
      %v862 = vsel %vm857, %v851, 0
      %v865 = vsel %vm857, %v856, 0
      %867 = vmatprep.subr.bf16.mxu0 0
      %868 = vmatpush1.bf16.xpose.msra.mxu0 0
      %869 = vmatprep.subr.bf16.mxu0 0
      %870 = vmatpush1.bf16.xpose.msra.mxu0 0
      %871 = vmatprep.subr.bf16.mxu0 0
      %872 = vmatpush1.bf16.xpose.msra.mxu0 0
      %873 = vmatprep.subr.bf16.mxu0 0
      %874 = vmatpush1.bf16.xpose.msra.mxu0 0
      %875 = vmatprep.subr.bf16.mxu0 0
      %876 = vmatpush1.bf16.xpose.msra.mxu0 0
      %877 = vmatprep.subr.bf16.mxu0 0
      %878 = vmatpush1.bf16.xpose.msra.mxu0 0
      %879 = vmatprep.subr.bf16.mxu0 0
      %880 = vmatpush1.bf16.xpose.msra.mxu0 0
      %881 = vmatprep.subr.bf16.mxu0 0
      %882 = vmatpush1.bf16.xpose.msra.mxu0 %v865
      %883 = vmatprep.subr.bf16.mxu0 0
      %884 = vmatpush2.bf16.xpose.msra.mxu0 0
      %885 = vmatprep.subr.bf16.mxu0 0
      %886 = vmatpush2.bf16.xpose.msra.mxu0 0
      %887 = vmatprep.subr.bf16.mxu0 0
      %888 = vmatpush2.bf16.xpose.msra.mxu0 0
      %889 = vmatprep.subr.bf16.mxu0 0
      %890 = vmatpush2.bf16.xpose.msra.mxu0 0
      %891 = vmatprep.subr.bf16.mxu0 0
      %892 = vmatpush2.bf16.xpose.msra.mxu0 0
      %893 = vmatprep.subr.bf16.mxu0 0
      %894 = vmatpush2.bf16.xpose.msra.mxu0 0
      %895 = vmatprep.subr.bf16.mxu0 0
      %896 = vmatpush2.bf16.xpose.msra.mxu0 0
      %897 = vmatprep.subr.bf16.mxu0 0
      %898 = vmatpush2.bf16.xpose.msra.mxu0 0
      %899 = vmatprep.mubr.bf16.mxu0 0
      %900 = vmatmul.mubr.bf16.gmra.mxu0 %v859
      %v901 = vpop.f32.mrf.mxu0
      %v902 = vadd.f32 0.0, %v901
      %v903 = vpop.f32.mrf.mxu0
      %v904 = vpop.f32.mrf.mxu0
      %v905 = vadd.f32 0.0, %v904
      %v906 = vpop.f32.mrf.mxu0
      %907 = vmatprep.mubr.bf16.mxu0 0
      %908 = vmatmul.mubr.bf16.gmra.mxu0 %v862
      %v909 = vpop.f32.mrf.mxu0
      %v910 = vadd.f32 0.0, %v909
      %v911 = vpop.f32.mrf.mxu0
      %v912 = vpop.f32.mrf.mxu0
      %v913 = vadd.f32 0.0, %v912
      %v914 = vpop.f32.mrf.mxu0
      %915 = vdwg.mxu0
      %v916 = vsel %vm857, %v902, -inf
      %917 = vmax.xlane.f32.xlu0 %v916
      %v918 = vpop.xlane.xlu0 %917
      %v919 = vsel %vm857, %v905, -inf
      %920 = vmax.xlane.f32.xlu0 %v919
      %v921 = vpop.xlane.xlu0 %920
      %v922 = vsel %vm857, %v910, -inf
      %923 = vmax.xlane.f32.xlu0 %v922
      %v924 = vpop.xlane.xlu0 %923
      %v925 = vsel %vm857, %v913, -inf
      %926 = vmax.xlane.f32.xlu0 %v925
      %v927 = vpop.xlane.xlu0 %926
      %v928 = vsub.f32 %v902, %v918
      %v929 = vsub.f32 %v905, %v921
      %v930 = vsub.f32 %v910, %v924
      %v931 = vsub.f32 %v913, %v927
      %v932 = vmul.f32 %v928, 1.442695
      %v933 = vpow.pop %v932
      %v934 = vmul.f32 %v929, 1.442695
      %v935 = vpow.pop %v934
      %v936 = vmul.f32 %v930, 1.442695
      %v937 = vpow.pop %v936
      %v938 = vmul.f32 %v931, 1.442695
      %v939 = vpow.pop %v938
      %v940 = vsel %vm857, %v933, 0.0
      %941 = vadd.xlane.f32.xlu0 %v940
      %v942 = vpop.xlane.xlu0 %941
      %v943 = vsel %vm857, %v935, 0.0
      %944 = vadd.xlane.f32.xlu0 %v943
      %v945 = vpop.xlane.xlu0 %944
      %v946 = vsel %vm857, %v937, 0.0
      %947 = vadd.xlane.f32.xlu0 %v946
      %v948 = vpop.xlane.xlu0 %947
      %v949 = vsel %vm857, %v939, 0.0
      %950 = vadd.xlane.f32.xlu0 %v949
      %v951 = vpop.xlane.xlu0 %950
      %v952 = vpack.c.bf16 %v935, %v933
      %v953 = vpack.c.bf16 %v939, %v937
      %v956 = vunpack.c.l.b16 %v848
      %v957 = vunpack.c.l.b16 %v849
      %v958 = vpack.c.b16 %v957, %v956
      %v961 = vsel %vm857, %v952, 0
      %v964 = vsel %vm857, %v953, 0
      %966 = vmatprep.subr.bf16.mxu0 0
      %967 = vmatpush1.bf16.msra.mxu0 0
      %968 = vmatprep.subr.bf16.mxu0 0
      %969 = vmatpush1.bf16.msra.mxu0 0
      %970 = vmatprep.subr.bf16.mxu0 0
      %971 = vmatpush1.bf16.msra.mxu0 0
      %972 = vmatprep.subr.bf16.mxu0 0
      %973 = vmatpush1.bf16.msra.mxu0 0
      %974 = vmatprep.subr.bf16.mxu0 0
      %975 = vmatpush1.bf16.msra.mxu0 0
      %976 = vmatprep.subr.bf16.mxu0 0
      %977 = vmatpush1.bf16.msra.mxu0 0
      %978 = vmatprep.subr.bf16.mxu0 0
      %979 = vmatpush1.bf16.msra.mxu0 0
      %980 = vmatprep.subr.bf16.mxu0 0
      %981 = vmatpush1.bf16.msra.mxu0 %v958
      %982 = vmatprep.subr.bf16.mxu0 0
      %983 = vmatpush2.bf16.msra.mxu0 0
      %984 = vmatprep.subr.bf16.mxu0 0
      %985 = vmatpush2.bf16.msra.mxu0 0
      %986 = vmatprep.subr.bf16.mxu0 0
      %987 = vmatpush2.bf16.msra.mxu0 0
      %988 = vmatprep.subr.bf16.mxu0 0
      %989 = vmatpush2.bf16.msra.mxu0 0
      %990 = vmatprep.subr.bf16.mxu0 0
      %991 = vmatpush2.bf16.msra.mxu0 0
      %992 = vmatprep.subr.bf16.mxu0 0
      %993 = vmatpush2.bf16.msra.mxu0 0
      %994 = vmatprep.subr.bf16.mxu0 0
      %995 = vmatpush2.bf16.msra.mxu0 0
      %996 = vmatprep.subr.bf16.mxu0 0
      %997 = vmatpush2.bf16.msra.mxu0 0
      %998 = vmatprep.mubr.bf16.mxu0 0
      %999 = vmatmul.mubr.bf16.gmra.mxu0 %v961
      %v1000 = vpop.f32.mrf.mxu0
      %v1001 = vadd.f32 0.0, %v1000
      %v1002 = vpop.f32.mrf.mxu0
      %v1003 = vpop.f32.mrf.mxu0
      %v1004 = vadd.f32 0.0, %v1003
      %v1005 = vpop.f32.mrf.mxu0
      %1006 = vmatprep.mubr.bf16.mxu0 0
      %1007 = vmatmul.mubr.bf16.gmra.mxu0 %v964
      %v1008 = vpop.f32.mrf.mxu0
      %v1009 = vadd.f32 0.0, %v1008
      %v1010 = vpop.f32.mrf.mxu0
      %v1011 = vpop.f32.mrf.mxu0
      %v1012 = vadd.f32 0.0, %v1011
      %v1013 = vpop.f32.mrf.mxu0
      %1014 = vdwg.mxu0
      %v1015 = vrcp.pop %v942
      %v1016 = vrcp.pop %v945
      %v1017 = vrcp.pop %v948
      %v1018 = vrcp.pop %v951
      %v1019 = vmul.f32 %v1001, %v1015
      %v1020 = vmul.f32 %v1004, %v1016
      %v1021 = vmul.f32 %v1009, %v1017
      %v1022 = vmul.f32 %v1012, %v1018
      %1025 = vrot.lane.b32.xlu0 %v850, 112
      %v1026 = vpop.permute.xlu0 %1025
      %1027 = vrot.lane.b32.xlu0 %v851, 112
      %v1028 = vpop.permute.xlu0 %1027
      %1029 = vrot.lane.b32.xlu0 %v856, 112
      %v1030 = vpop.permute.xlu0 %1029
      %v1032 = vsel %vm857, %v1026, 0
      %v1035 = vsel %vm857, %v1028, 0
      %v1038 = vsel %vm857, %v1030, 0
      %1040 = vmatprep.subr.bf16.mxu0 0
      %1041 = vmatpush1.bf16.xpose.msra.mxu0 0
      %1042 = vmatprep.subr.bf16.mxu0 0
      %1043 = vmatpush1.bf16.xpose.msra.mxu0 0
      %1044 = vmatprep.subr.bf16.mxu0 0
      %1045 = vmatpush1.bf16.xpose.msra.mxu0 0
      %1046 = vmatprep.subr.bf16.mxu0 0
      %1047 = vmatpush1.bf16.xpose.msra.mxu0 0
      %1048 = vmatprep.subr.bf16.mxu0 0
      %1049 = vmatpush1.bf16.xpose.msra.mxu0 0
      %1050 = vmatprep.subr.bf16.mxu0 0
      %1051 = vmatpush1.bf16.xpose.msra.mxu0 0
      %1052 = vmatprep.subr.bf16.mxu0 0
      %1053 = vmatpush1.bf16.xpose.msra.mxu0 0
      %1054 = vmatprep.subr.bf16.mxu0 0
      %1055 = vmatpush1.bf16.xpose.msra.mxu0 %v1038
      %1056 = vmatprep.subr.bf16.mxu0 0
      %1057 = vmatpush2.bf16.xpose.msra.mxu0 0
      %1058 = vmatprep.subr.bf16.mxu0 0
      %1059 = vmatpush2.bf16.xpose.msra.mxu0 0
      %1060 = vmatprep.subr.bf16.mxu0 0
      %1061 = vmatpush2.bf16.xpose.msra.mxu0 0
      %1062 = vmatprep.subr.bf16.mxu0 0
      %1063 = vmatpush2.bf16.xpose.msra.mxu0 0
      %1064 = vmatprep.subr.bf16.mxu0 0
      %1065 = vmatpush2.bf16.xpose.msra.mxu0 0
      %1066 = vmatprep.subr.bf16.mxu0 0
      %1067 = vmatpush2.bf16.xpose.msra.mxu0 0
      %1068 = vmatprep.subr.bf16.mxu0 0
      %1069 = vmatpush2.bf16.xpose.msra.mxu0 0
      %1070 = vmatprep.subr.bf16.mxu0 0
      %1071 = vmatpush2.bf16.xpose.msra.mxu0 0
      %1072 = vmatprep.mubr.bf16.mxu0 0
      %1073 = vmatmul.mubr.bf16.gmra.mxu0 %v1032
      %v1074 = vpop.f32.mrf.mxu0
      %v1075 = vadd.f32 0.0, %v1074
      %v1076 = vpop.f32.mrf.mxu0
      %v1077 = vpop.f32.mrf.mxu0
      %v1078 = vadd.f32 0.0, %v1077
      %v1079 = vpop.f32.mrf.mxu0
      %1080 = vmatprep.mubr.bf16.mxu0 0
      %1081 = vmatmul.mubr.bf16.gmra.mxu0 %v1035
      %v1082 = vpop.f32.mrf.mxu0
      %v1083 = vadd.f32 0.0, %v1082
      %v1084 = vpop.f32.mrf.mxu0
      %v1085 = vpop.f32.mrf.mxu0
      %v1086 = vadd.f32 0.0, %v1085
      %v1087 = vpop.f32.mrf.mxu0
      %1088 = vdwg.mxu0
      %v1089 = vsel %vm857, %v1075, -inf
      %1090 = vmax.xlane.f32.xlu0 %v1089
      %v1091 = vpop.xlane.xlu0 %1090
      %v1092 = vsel %vm857, %v1078, -inf
      %1093 = vmax.xlane.f32.xlu0 %v1092
      %v1094 = vpop.xlane.xlu0 %1093
      %v1095 = vsel %vm857, %v1083, -inf
      %1096 = vmax.xlane.f32.xlu0 %v1095
      %v1097 = vpop.xlane.xlu0 %1096
      %v1098 = vsel %vm857, %v1086, -inf
      %1099 = vmax.xlane.f32.xlu0 %v1098
      %v1100 = vpop.xlane.xlu0 %1099
      %v1101 = vsub.f32 %v1075, %v1091
      %v1102 = vsub.f32 %v1078, %v1094
      %v1103 = vsub.f32 %v1083, %v1097
      %v1104 = vsub.f32 %v1086, %v1100
      %v1105 = vmul.f32 %v1101, 1.442695
      %v1106 = vpow.pop %v1105
      %v1107 = vmul.f32 %v1102, 1.442695
      %v1108 = vpow.pop %v1107
      %v1109 = vmul.f32 %v1103, 1.442695
      %v1110 = vpow.pop %v1109
      %v1111 = vmul.f32 %v1104, 1.442695
      %v1112 = vpow.pop %v1111
      %v1113 = vsel %vm857, %v1106, 0.0
      %1114 = vadd.xlane.f32.xlu0 %v1113
      %v1115 = vpop.xlane.xlu0 %1114
      %v1116 = vsel %vm857, %v1108, 0.0
      %1117 = vadd.xlane.f32.xlu0 %v1116
      %v1118 = vpop.xlane.xlu0 %1117
      %v1119 = vsel %vm857, %v1110, 0.0
      %1120 = vadd.xlane.f32.xlu0 %v1119
      %v1121 = vpop.xlane.xlu0 %1120
      %v1122 = vsel %vm857, %v1112, 0.0
      %1123 = vadd.xlane.f32.xlu0 %v1122
      %v1124 = vpop.xlane.xlu0 %1123
      %v1125 = vpack.c.bf16 %v1108, %v1106
      %v1126 = vpack.c.bf16 %v1112, %v1110
      %1127 = vrot.lane.b32.xlu0 %v958, 112
      %v1128 = vpop.permute.xlu0 %1127
      %v1131 = vsel %vm857, %v1125, 0
      %v1134 = vsel %vm857, %v1126, 0
      %1136 = vmatprep.subr.bf16.mxu0 0
      %1137 = vmatpush1.bf16.msra.mxu0 0
      %1138 = vmatprep.subr.bf16.mxu0 0
      %1139 = vmatpush1.bf16.msra.mxu0 0
      %1140 = vmatprep.subr.bf16.mxu0 0
      %1141 = vmatpush1.bf16.msra.mxu0 0
      %1142 = vmatprep.subr.bf16.mxu0 0
      %1143 = vmatpush1.bf16.msra.mxu0 0
      %1144 = vmatprep.subr.bf16.mxu0 0
      %1145 = vmatpush1.bf16.msra.mxu0 0
      %1146 = vmatprep.subr.bf16.mxu0 0
      %1147 = vmatpush1.bf16.msra.mxu0 0
      %1148 = vmatprep.subr.bf16.mxu0 0
      %1149 = vmatpush1.bf16.msra.mxu0 0
      %1150 = vmatprep.subr.bf16.mxu0 0
      %1151 = vmatpush1.bf16.msra.mxu0 %v1128
      %1152 = vmatprep.subr.bf16.mxu0 0
      %1153 = vmatpush2.bf16.msra.mxu0 0
      %1154 = vmatprep.subr.bf16.mxu0 0
      %1155 = vmatpush2.bf16.msra.mxu0 0
      %1156 = vmatprep.subr.bf16.mxu0 0
      %1157 = vmatpush2.bf16.msra.mxu0 0
      %1158 = vmatprep.subr.bf16.mxu0 0
      %1159 = vmatpush2.bf16.msra.mxu0 0
      %1160 = vmatprep.subr.bf16.mxu0 0
      %1161 = vmatpush2.bf16.msra.mxu0 0
      %1162 = vmatprep.subr.bf16.mxu0 0
      %1163 = vmatpush2.bf16.msra.mxu0 0
      %1164 = vmatprep.subr.bf16.mxu0 0
      %1165 = vmatpush2.bf16.msra.mxu0 0
      %1166 = vmatprep.subr.bf16.mxu0 0
      %1167 = vmatpush2.bf16.msra.mxu0 0
      %1168 = vmatprep.mubr.bf16.mxu0 0
      %1169 = vmatmul.mubr.bf16.gmra.mxu0 %v1131
      %v1170 = vpop.f32.mrf.mxu0
      %v1171 = vadd.f32 0.0, %v1170
      %v1172 = vpop.f32.mrf.mxu0
      %v1173 = vpop.f32.mrf.mxu0
      %v1174 = vadd.f32 0.0, %v1173
      %v1175 = vpop.f32.mrf.mxu0
      %1176 = vmatprep.mubr.bf16.mxu0 0
      %1177 = vmatmul.mubr.bf16.gmra.mxu0 %v1134
      %v1178 = vpop.f32.mrf.mxu0
      %v1179 = vadd.f32 0.0, %v1178
      %v1180 = vpop.f32.mrf.mxu0
      %v1181 = vpop.f32.mrf.mxu0
      %v1182 = vadd.f32 0.0, %v1181
      %v1183 = vpop.f32.mrf.mxu0
      %1184 = vdwg.mxu0
      %v1185 = vrcp.pop %v1115
      %v1186 = vrcp.pop %v1118
      %v1187 = vrcp.pop %v1121
      %v1188 = vrcp.pop %v1124
      %v1189 = vmul.f32 %v1171, %v1185
      %v1190 = vmul.f32 %v1174, %v1186
      %v1191 = vmul.f32 %v1179, %v1187
      %v1192 = vmul.f32 %v1182, %v1188
      %1197 = vrot.lane.b32.xlu0 %v1189, 16
      %v1198 = vpop.permute.xlu0 %1197
      %1199 = vrot.lane.b32.xlu0 %v1190, 16
      %v1200 = vpop.permute.xlu0 %1199
      %1201 = vrot.lane.b32.xlu0 %v1191, 16
      %v1202 = vpop.permute.xlu0 %1201
      %1203 = vrot.lane.b32.xlu0 %v1192, 16
      %v1204 = vpop.permute.xlu0 %1203
      %v1209 = vsel %vm857, %v1019, %v1198
      %v1210 = vsel %vm857, %v1020, %v1200
      %v1211 = vsel %vm857, %v1021, %v1202
      %v1212 = vsel %vm857, %v1022, %v1204
      %v1213 = vpack.c.bf16 %v1210, %v1209
      %v1214 = vpack.c.bf16 %v1212, %v1211
      %v1215 = vld [vmem:[%s9] sm:$0xf]
      %v1216 = vld [vmem:[%s9 + $0x4] sm:$0xf]
      %v1217 = vld [vmem:[%s9 + $0x8] sm:$0xf]
      %v1218 = vld [vmem:[%s9 + $0xc] sm:$0xf]
      %v1219 = vld [vmem:[%s10] sm:$0x1]
      %v1221 = vlaneseq
      %v1222 = vshrl.u32 %v1221, 7
      %v1223 = vsub.s32 0, %v1222
      %v1224 = vrot.slane %v1219, %v1223
      %v1230 = vunpack.c.l.b16 %v1215
      %v1231 = vunpack.c.l.b16 %v1216
      %v1232 = vunpack.c.l.b16 %v1217
      %v1233 = vunpack.c.l.b16 %v1218
      %v1234 = vpack.c.b16 %v1231, %v1230
      %v1235 = vpack.c.b16 %v1233, %v1232
      %v1239 = vsel %vm786, %v1213, 0
      %v1242 = vsel %vm786, %v1214, 0
      %1244 = vmatprep.subr.bf16.mxu0 0
      %1245 = vmatpush1.bf16.msra.mxu0 0
      %1246 = vmatprep.subr.bf16.mxu0 0
      %1247 = vmatpush1.bf16.msra.mxu0 0
      %1248 = vmatprep.subr.bf16.mxu0 0
      %1249 = vmatpush1.bf16.msra.mxu0 0
      %1250 = vmatprep.subr.bf16.mxu0 0
      %1251 = vmatpush1.bf16.msra.mxu0 0
      %1252 = vmatprep.subr.bf16.mxu0 0
      %1253 = vmatpush1.bf16.msra.mxu0 0
      %1254 = vmatprep.subr.bf16.mxu0 0
      %1255 = vmatpush1.bf16.msra.mxu0 0
      %1256 = vmatprep.subr.bf16.mxu0 0
      %1257 = vmatpush1.bf16.msra.mxu0 %v1235
      %1258 = vmatprep.subr.bf16.mxu0 0
      %1259 = vmatpush1.bf16.msra.mxu0 %v1234
      %1260 = vmatprep.subr.bf16.mxu0 0
      %1261 = vmatpush2.bf16.msra.mxu0 0
      %1262 = vmatprep.subr.bf16.mxu0 0
      %1263 = vmatpush2.bf16.msra.mxu0 0
      %1264 = vmatprep.subr.bf16.mxu0 0
      %1265 = vmatpush2.bf16.msra.mxu0 0
      %1266 = vmatprep.subr.bf16.mxu0 0
      %1267 = vmatpush2.bf16.msra.mxu0 0
      %1268 = vmatprep.subr.bf16.mxu0 0
      %1269 = vmatpush2.bf16.msra.mxu0 0
      %1270 = vmatprep.subr.bf16.mxu0 0
      %1271 = vmatpush2.bf16.msra.mxu0 0
      %1272 = vmatprep.subr.bf16.mxu0 0
      %1273 = vmatpush2.bf16.msra.mxu0 0
      %1274 = vmatprep.subr.bf16.mxu0 0
      %1275 = vmatpush2.bf16.msra.mxu0 0
      %1276 = vmatprep.mubr.bf16.mxu0 0
      %1277 = vmatmul.mubr.bf16.gmra.mxu0 %v1239
      %v1278 = vpop.f32.mrf.mxu0
      %v1279 = vadd.f32 %v1224, %v1278
      %v1280 = vpop.f32.mrf.mxu0
      %v1281 = vpop.f32.mrf.mxu0
      %v1282 = vadd.f32 %v1224, %v1281
      %v1283 = vpop.f32.mrf.mxu0
      %1284 = vmatprep.mubr.bf16.mxu0 0
      %1285 = vmatmul.mubr.bf16.gmra.mxu0 %v1242
      %v1286 = vpop.f32.mrf.mxu0
      %v1287 = vadd.f32 %v1224, %v1286
      %v1288 = vpop.f32.mrf.mxu0
      %v1289 = vpop.f32.mrf.mxu0
      %v1290 = vadd.f32 %v1224, %v1289
      %v1291 = vpop.f32.mrf.mxu0
      %1292 = vdwg.mxu0
      %1293 = vst.msk [vmem:[%s444] sm:$0xff] %vm786, %v1279
      %1294 = vst.msk [vmem:[%s444 + $0x8] sm:$0xff] %vm786, %v1282
      %1295 = vst.msk [vmem:[%s444 + $0x10] sm:$0xff] %vm786, %v1287
      %1296 = vst.msk [vmem:[%s444 + $0x18] sm:$0xff] %vm786, %v1290
      %s1297 = smul.u32 4, %s27
      %p1298 = scmp.lt.s32.totalorder %s26, 1
      %s1299 = scalar_select %p1298, %s26, 1
      %p1300 = scmp.lt.s32.totalorder %s1297, 7
      %s1301 = scalar_select %p1300, %s1297, 7
      %s1302 = smul.addr %s1299, 8
      %s1303 = sadd.s32 %s1301, %s1302
      %s1304 = smul.addr %s1303, 8
      %s1305 = scalar_lea.vmem %s11, %s1304
      // Predicated region
      $region69: #{_lambda_.1} parent=63 // pred_check
        %p1306 = pneg %p297
      $region70: #{_lambda_.1} parent=63 // pred_check_branch
        %1308 = sbr.rel (%p1306) target = $region72
      $region71: #{_lambda_.1} parent=63 // pred_region
        %s1309 = smul.u32 4, %s27
      $region72: #{_lambda_.1} parent=63 // pred_fallthru
        _
    $region64: #{_lambda_.1} parent=5 // pred_fallthru
      _
    %p1310 = scmp.le.s32.totalorder 2, %s17
    // Predicated region
    $region73: #{_lambda_.1} parent=5 // pred_check
      %p1311 = pneg %p1310
    $region74: #{_lambda_.1} parent=5 // pred_check_branch
      %1313 = sbr.rel (%p1311) target = $region76
    $region75: #{_lambda_.1} parent=5 // pred_region
      %s1314 = ssub.s32 %s17, 2
      // Predicated region
      $region77: #{_lambda_.1} parent=75 // pred_check
        %p1315 = pneg %p303
      $region78: #{_lambda_.1} parent=75 // pred_check_branch
        %1317 = sbr.rel (%p1315) target = $region80
      $region79: #{_lambda_.1} parent=75 // pred_region
        %s1318 = smul.u32 4, %s29
        %p1319 = scmp.lt.s32.totalorder %s28, 1
        %s1320 = scalar_select %p1319, %s28, 1
        %p1321 = scmp.lt.s32.totalorder %s1318, 7
        %s1322 = scalar_select %p1321, %s1318, 7
        %s1323 = smul.addr %s1320, 8
        %s1324 = sadd.s32 %s1322, %s1323
        %s1325 = smul.addr %s1324, 8
        %s1326 = scalar_lea.vmem %s11, %s1325
      $region80: #{_lambda_.1} parent=75 // pred_fallthru
        _
    $region76: #{_lambda_.1} parent=5 // pred_fallthru
      _
  $region6: #{_lambda_.1} parent=0 // loop_footer
    %s21 = sadd.s32 1, %s17
  $region7: #{_lambda_.1} parent=0 // loop_footer_branch
    %16 = sbr.rel target = $region3
  $region8: #{_lambda_.1} parent=0 // loop_exit
    _

</llo_original>
